<compile_context>
chip_gen: v7x
topology: tpu7x:2x2x1
jax: 0.10.0
libtpu: 0.0.40
codegen_flags: <defaults>
</compile_context>

<pallas_src>
import functools

import jax
import jax.numpy as jnp
from jax.experimental import pallas as pl
from jax.experimental.pallas import tpu as pltpu


def _round_up(x: int, m: int) -> int:
    return (x + m - 1) // m * m


def _tpu_vmem_and_cores():
    """Return (per-core VMEM bytes, TensorCores per chip) with safe fallbacks."""
    vmem = 64 * 2**20  # conservative default: v7x per-TC VMEM (v5e/v6e: 128 MiB)
    cores = 0
    try:
        info = pltpu.get_tpu_info()
        vmem = int(getattr(info, "vmem_capacity_bytes", vmem))
        for attr in ("num_cores", "num_tensorcores", "tensorcore_count",
                     "num_cores_per_chip"):
            val = getattr(info, attr, None)
            if val:
                cores = int(val)
                break
    except Exception:  # query unavailable; keep conservative defaults
        pass
    if cores <= 0:
        # v7x exposes 64 MiB per-TC VMEM and has 2 TCs/chip; v5e/v6e have one.
        cores = 2 if vmem <= 64 * 2**20 else 1
    return vmem, cores


def _mlp_decoder_kernel(x_ref, e_ref, w1_ref, b1_ref, g_ref, beta_ref,
                        w2_ref, b2_ref, o_ref, *, use_tanh, obs_dim,
                        latent_dim, fc1_on_vpu):
    f32 = jnp.float32
    if fc1_on_vpu:
        # Tiny contraction (in_dim <= 32): a K << 128 MXU push is mostly fixed
        # latency, so fc1 runs as in_dim broadcast-FMAs on the VPU instead.
        # This also removes any need to materialize concat([x, e]).
        h = b1_ref[...].astype(f32)                       # (1, H), broadcasts
        for k in range(obs_dim):
            h = h + x_ref[:, k:k + 1].astype(f32) * w1_ref[k:k + 1, :].astype(f32)
        for k in range(latent_dim):
            h = h + (e_ref[:, k:k + 1].astype(f32)
                     * w1_ref[obs_dim + k:obs_dim + k + 1, :].astype(f32))
    else:
        # One MXU push for fc1: lane-concat the loaded tiles in VMEM (no HBM
        # concat round-trip) against the unsplit W1 block. f32 accumulation.
        h0 = jnp.concatenate([x_ref[...], e_ref[...]], axis=-1)
        h = jnp.dot(h0, w1_ref[...], preferred_element_type=f32)
        h = h + b1_ref[...].astype(f32)
    h = jnp.maximum(h, 0.0)

    # LayerNorm over the hidden (last) dim; PyTorch defaults (eps=1e-5, biased
    # variance). Fused so only ~2-3 copies of the (tb, hidden) f32 tile live.
    mean = jnp.mean(h, axis=-1, keepdims=True)
    h = h - mean
    var = jnp.mean(h * h, axis=-1, keepdims=True)
    h = (h * (jax.lax.rsqrt(var + 1e-5) * g_ref[...].astype(f32))
         + beta_ref[...].astype(f32))

    # fc2 (+ optional tanh): feed the MXU in the weights' dtype, accumulate f32.
    out = jnp.dot(h.astype(w2_ref.dtype), w2_ref[...],
                  preferred_element_type=f32)
    out = out + b2_ref[...].astype(f32)
    if use_tanh:
        out = jnp.tanh(out)
    o_ref[...] = out.astype(o_ref.dtype)


def _pick_batch_tile(B, in_dim, hidden_dim, act_cols, act_bytes, out_bytes,
                     weight_bytes, row_mult, vmem_bytes, num_tc, batch_tile):
    b_pad = _round_up(B, row_mult)
    if batch_tile is not None:
        tb = batch_tile
    else:
        # Per-step VMEM working set per batch row: double-buffered input tiles,
        # double-buffered output tile, and ~3 f32 copies of the (tb, hidden)
        # intermediate plus the f32 out tile the compiler keeps live.
        per_row = (2 * in_dim * act_bytes + 2 * act_cols * out_bytes
                   + (3 * hidden_dim + act_cols) * 4)
        # Weights stay resident; target ~45% of per-core VMEM for the rest so
        # the pipeline has headroom on every generation (128 MiB v5e/v6e,
        # 64 MiB v7x).
        budget = max(2 * 2**20, int(0.45 * vmem_bytes) - 2 * weight_bytes)
        tb = budget // per_row // row_mult * row_mult
        tb = max(row_mult, min(1024, tb))
        if num_tc >= 2 and b_pad > row_mult:
            # 2-TC chips (v7x): prefer an even split across TensorCores.
            # Ceil + round-up, so e.g. B=50 -> 2x32 tiles, not 3x24.
            per_core = _round_up(pl.cdiv(b_pad, num_tc), row_mult)
            if per_core < tb:
                tb = per_core
    tb = min(tb, b_pad)
    if tb % row_mult != 0:
        raise ValueError(f"batch_tile must be a multiple of {row_mult} "
                         f"for this operand dtype")
    return tb


def _vmem_limit(tb, in_dim, hidden_dim, act_cols, act_bytes, out_bytes,
                weight_bytes, weight_buffers, vmem_cap_bytes):
    needed = (2 * tb * in_dim * act_bytes            # double-buffered x|e tiles
              + 2 * tb * act_cols * out_bytes        # double-buffered out tile
              + weight_buffers * weight_bytes        # resident params
              + 4 * tb * max(hidden_dim, act_cols) * 4)  # f32 intermediates
    limit = max(8 * 2**20, 2 * needed)
    # Never request more than ~80% of this generation's physical per-core VMEM
    # (v7x is only 64 MiB; v5e/v6e are 128 MiB).
    return int(min(int(0.8 * vmem_cap_bytes), limit))


def mlp_decoder_forward(x, e, params, *, use_tanh=True, batch_tile=None,
                        mxu_dtype=jnp.bfloat16):
    """x: [B, obs_dim], e: [B, latent_dim] -> [B, act_dim]."""
    B, obs_dim = x.shape
    latent_dim = e.shape[1]
    w1, b1, g, beta, w2, b2 = (params["w1"], params["b1"], params["ln_g"],
                               params["ln_b"], params["w2"], params["b2"])
    in_dim, hidden_dim = w1.shape
    act_dim = w2.shape[1]
    assert in_dim == obs_dim + latent_dim
    out_dtype = x.dtype
    out_bytes = jnp.dtype(out_dtype).itemsize

    vmem_cap, num_tc = _tpu_vmem_and_cores()

    # Lane-dense output padding only when it does not inflate HBM writeback:
    # either act_dim is already a sizable fraction of 128, or the whole padded
    # output is tiny (overhead-bound regime).
    act_pad128 = _round_up(act_dim, 128)
    pad_out = (act_pad128 != act_dim
               and (act_dim >= 64 or B * act_pad128 * out_bytes <= 2 * 2**20))
    act_cols = act_pad128 if pad_out else act_dim
    if pad_out:
        # Zero weight columns + zero bias -> tanh(0)=0; sliced off afterwards.
        w2 = jnp.pad(w2, ((0, 0), (0, act_cols - act_dim)))
        b2 = jnp.pad(b2, ((0, 0), (0, act_cols - act_dim)))

    # MXU operands in bf16 by default (native MXU dtype on v5e/v6e/v7x, halves
    # weight traffic/VMEM). Bias/ReLU/LayerNorm/tanh stay f32; accumulation f32.
    if mxu_dtype is not None:
        x, e = x.astype(mxu_dtype), e.astype(mxu_dtype)
        w1, w2 = w1.astype(mxu_dtype), w2.astype(mxu_dtype)
    act_bytes = jnp.dtype(x.dtype).itemsize
    w_bytes = jnp.dtype(w2.dtype).itemsize
    # Sublane packing of the activation tiles: 8 rows (f32), 16 (bf16), 32 (8b).
    row_mult = max(8, 32 // act_bytes)

    weight_bytes = ((w1.size + w2.size) * w_bytes
                    + (b1.size + g.size + beta.size + b2.size) * 4)

    tb = _pick_batch_tile(B, in_dim, hidden_dim, act_cols, act_bytes, out_bytes,
                          weight_bytes, row_mult, vmem_cap, num_tc, batch_tile)
    Bp = _round_up(B, tb)
    if Bp != B:
        # Zero rows are numerically harmless (var+eps > 0) and discarded below.
        x = jnp.pad(x, ((0, Bp - B), (0, 0)))
        e = jnp.pad(e, ((0, Bp - B), (0, 0)))
    grid = (Bp // tb,)

    kernel = functools.partial(_mlp_decoder_kernel, use_tanh=use_tanh,
                               obs_dim=obs_dim, latent_dim=latent_dim,
                               fc1_on_vpu=(in_dim <= 32))

    cost = pl.CostEstimate(
        flops=2 * Bp * (in_dim * hidden_dim + hidden_dim * act_cols),
        transcendentals=Bp * ((act_cols if use_tanh else 0) + 1),  # tanh + rsqrt
        bytes_accessed=(Bp * in_dim * act_bytes + weight_bytes
                        + Bp * act_cols * out_bytes),
    )

    def _run(weight_buffers):
        def param_spec(shape):
            # Constant-index param blocks: fetched once. Single-buffer them so
            # W1/W2 occupy 1x (not 2x) of VMEM at real hidden sizes (matters
            # most on v7x's 64 MiB VMEM).
            if weight_buffers == 1:
                return pl.BlockSpec(shape, lambda i: (0, 0),
                                    pipeline_mode=pl.Buffered(1))
            return pl.BlockSpec(shape, lambda i: (0, 0))

        return pl.pallas_call(
            kernel,
            out_shape=jax.ShapeDtypeStruct((Bp, act_cols), out_dtype),
            grid_spec=pltpu.PrefetchScalarGridSpec(
                num_scalar_prefetch=0,
                grid=grid,
                in_specs=[
                    pl.BlockSpec((tb, obs_dim), lambda i: (i, 0)),      # x tile
                    pl.BlockSpec((tb, latent_dim), lambda i: (i, 0)),   # e tile
                    param_spec((in_dim, hidden_dim)),                   # W1
                    param_spec((1, hidden_dim)),                        # b1
                    param_spec((1, hidden_dim)),                        # LN gamma
                    param_spec((1, hidden_dim)),                        # LN beta
                    param_spec((hidden_dim, act_cols)),                 # W2
                    param_spec((1, act_cols)),                          # b2
                ],
                out_specs=pl.BlockSpec((tb, act_cols), lambda i: (i, 0)),
            ),
            compiler_params=pltpu.CompilerParams(
                dimension_semantics=("parallel",),
                vmem_limit_bytes=_vmem_limit(tb, in_dim, hidden_dim, act_cols,
                                             act_bytes, out_bytes, weight_bytes,
                                             weight_buffers, vmem_cap)),
            cost_estimate=cost,
        )(x, e, w1, b1, g, beta, w2, b2)

    try:
        out_padded = _run(1)   # single-buffered constant weight/bias blocks
    except Exception:
        # Fallback for jax/Mosaic builds that reject pipeline_mode=Buffered(1).
        out_padded = _run(2)

    if Bp != B or act_cols != act_dim:
        return out_padded[:B, :act_dim]
    return out_padded


def init_params(key, obs_dim, latent_dim, hidden_dim, act_dim):
    """Deterministic synthetic params (PyTorch-Linear-like uniform init)."""
    in_dim = obs_dim + latent_dim
    k1, k2, k3, k4 = jax.random.split(key, 4)
    lim1 = 1.0 / jnp.sqrt(in_dim)
    lim2 = 1.0 / jnp.sqrt(hidden_dim)
    return {
        "w1": jax.random.uniform(k1, (in_dim, hidden_dim), jnp.float32, -lim1, lim1),
        "b1": jax.random.uniform(k2, (1, hidden_dim), jnp.float32, -lim1, lim1),
        "ln_g": jnp.ones((1, hidden_dim), jnp.float32),
        "ln_b": jnp.zeros((1, hidden_dim), jnp.float32),
        "w2": jax.random.uniform(k3, (hidden_dim, act_dim), jnp.float32, -lim2, lim2),
        "b2": jax.random.uniform(k4, (1, act_dim), jnp.float32, -lim2, lim2),
    }


def _reference_forward(x, e, params, use_tanh):
    """Pure-JAX reference matching the PyTorch semantics (true-f32 matmuls)."""
    hp = jax.lax.Precision.HIGHEST
    h0 = jnp.concatenate([x, e], axis=-1)
    h = jnp.maximum(jnp.dot(h0, params["w1"], precision=hp) + params["b1"], 0.0)
    mean = jnp.mean(h, axis=-1, keepdims=True)
    var = jnp.mean((h - mean) ** 2, axis=-1, keepdims=True)
    hn = (h - mean) * jax.lax.rsqrt(var + 1e-5) * params["ln_g"] + params["ln_b"]
    out = jnp.dot(hn, params["w2"], precision=hp) + params["b2"]
    return jnp.tanh(out) if use_tanh else out


if __name__ == "__main__":
    obs_dim, latent_dim, hidden_dim, act_dim = 6, 2, 32, 4
    use_tanh = True
    B = 50   # not tile-aligned: exercises batch padding (and 2-step grid on v7x)

    key = jax.random.PRNGKey(0)
    kx, ke, kp = jax.random.split(key, 3)
    x = jax.random.normal(kx, (B, obs_dim), jnp.float32)
    e = jax.random.normal(ke, (B, latent_dim), jnp.float32)
    params = init_params(kp, obs_dim, latent_dim, hidden_dim, act_dim)

    ref = _reference_forward(x, e, params, use_tanh)

    # f32 path (mxu_dtype=None): tolerance covers the in-kernel MXU f32 dot,
    # which Mosaic may decompose into bf16 passes at default precision.
    out_f32 = jax.block_until_ready(
        mlp_decoder_forward(x, e, params, use_tanh=use_tanh, mxu_dtype=None))
    assert out_f32.shape == (B, act_dim)
    assert jnp.allclose(out_f32, ref, atol=2e-3, rtol=2e-3), "f32 mismatch vs reference"

    # Default path: bf16 MXU operands, f32 accumulation / VPU / EUP math.
    out_bf16 = jax.block_until_ready(
        mlp_decoder_forward(x, e, params, use_tanh=use_tanh))
    assert out_bf16.shape == (B, act_dim)
    assert jnp.allclose(out_bf16, ref, atol=5e-2, rtol=5e-2), "bf16 mismatch vs reference"

    print("KERNEL_OK")
</pallas_src>

<mosaic_0001>
module attributes {stable_mosaic.version = 11 : i64} {
  func.func @_mlp_decoder_kernel(%arg0: i32, %arg1: memref<32x6xf32, #tpu.memory_space<vmem>>, %arg2: memref<32x2xf32, #tpu.memory_space<vmem>>, %arg3: memref<8x32xf32, #tpu.memory_space<vmem>>, %arg4: memref<1x32xf32, #tpu.memory_space<vmem>>, %arg5: memref<1x32xf32, #tpu.memory_space<vmem>>, %arg6: memref<1x32xf32, #tpu.memory_space<vmem>>, %arg7: memref<32x128xf32, #tpu.memory_space<vmem>>, %arg8: memref<1x128xf32, #tpu.memory_space<vmem>>, %arg9: memref<32x128xf32, #tpu.memory_space<vmem>>) attributes {dimension_semantics = [#tpu.dimension_semantics<parallel>], iteration_bounds = array<i64: 2>, scalar_prefetch = 0 : i64, scratch_operands = 0 : i64, tpu.core_type = #tpu.core_type<tc>, window_params = [{transform_indices = @transform_0, window_bounds = array<i64: 32, 6>}, {transform_indices = @transform_1, window_bounds = array<i64: 32, 2>}, {pipeline_mode = #tpu.pipeline_mode<synchronous>, transform_indices = @transform_2, window_bounds = array<i64: 8, 32>}, {pipeline_mode = #tpu.pipeline_mode<synchronous>, transform_indices = @transform_3, window_bounds = array<i64: 1, 32>}, {pipeline_mode = #tpu.pipeline_mode<synchronous>, transform_indices = @transform_4, window_bounds = array<i64: 1, 32>}, {pipeline_mode = #tpu.pipeline_mode<synchronous>, transform_indices = @transform_5, window_bounds = array<i64: 1, 32>}, {pipeline_mode = #tpu.pipeline_mode<synchronous>, transform_indices = @transform_6, window_bounds = array<i64: 32, 128>}, {pipeline_mode = #tpu.pipeline_mode<synchronous>, transform_indices = @transform_7, window_bounds = array<i64: 1, 128>}, {transform_indices = @transform_8, window_bounds = array<i64: 32, 128>}]} {
    %c0 = arith.constant 0 : index
    %c0_0 = arith.constant 0 : index
    %0 = vector.load %arg4[%c0, %c0_0] : memref<1x32xf32, #tpu.memory_space<vmem>>, vector<1x32xf32>
    %c0_1 = arith.constant 0 : index
    %c0_2 = arith.constant 0 : index
    %1 = vector.load %arg1[%c0_1, %c0_2] : memref<32x6xf32, #tpu.memory_space<vmem>>, vector<32x1xf32>
    %c0_3 = arith.constant 0 : index
    %c0_4 = arith.constant 0 : index
    %2 = vector.load %arg3[%c0_3, %c0_4] : memref<8x32xf32, #tpu.memory_space<vmem>>, vector<1x32xf32>
    %3 = vector.broadcast %1 : vector<32x1xf32> to vector<32x32xf32>
    %4 = vector.broadcast %2 : vector<1x32xf32> to vector<32x32xf32>
    %5 = arith.mulf %3, %4 : vector<32x32xf32>
    %6 = vector.broadcast %0 : vector<1x32xf32> to vector<32x32xf32>
    %7 = arith.addf %6, %5 : vector<32x32xf32>
    %c0_5 = arith.constant 0 : index
    %c1 = arith.constant 1 : index
    %8 = vector.load %arg1[%c0_5, %c1] : memref<32x6xf32, #tpu.memory_space<vmem>>, vector<32x1xf32>
    %c1_6 = arith.constant 1 : index
    %c0_7 = arith.constant 0 : index
    %9 = vector.load %arg3[%c1_6, %c0_7] : memref<8x32xf32, #tpu.memory_space<vmem>>, vector<1x32xf32>
    %10 = vector.broadcast %8 : vector<32x1xf32> to vector<32x32xf32>
    %11 = vector.broadcast %9 : vector<1x32xf32> to vector<32x32xf32>
    %12 = arith.mulf %10, %11 : vector<32x32xf32>
    %13 = arith.addf %7, %12 : vector<32x32xf32>
    %c0_8 = arith.constant 0 : index
    %c2 = arith.constant 2 : index
    %14 = vector.load %arg1[%c0_8, %c2] : memref<32x6xf32, #tpu.memory_space<vmem>>, vector<32x1xf32>
    %c2_9 = arith.constant 2 : index
    %c0_10 = arith.constant 0 : index
    %15 = vector.load %arg3[%c2_9, %c0_10] : memref<8x32xf32, #tpu.memory_space<vmem>>, vector<1x32xf32>
    %16 = vector.broadcast %14 : vector<32x1xf32> to vector<32x32xf32>
    %17 = vector.broadcast %15 : vector<1x32xf32> to vector<32x32xf32>
    %18 = arith.mulf %16, %17 : vector<32x32xf32>
    %19 = arith.addf %13, %18 : vector<32x32xf32>
    %c0_11 = arith.constant 0 : index
    %c3 = arith.constant 3 : index
    %20 = vector.load %arg1[%c0_11, %c3] : memref<32x6xf32, #tpu.memory_space<vmem>>, vector<32x1xf32>
    %c3_12 = arith.constant 3 : index
    %c0_13 = arith.constant 0 : index
    %21 = vector.load %arg3[%c3_12, %c0_13] : memref<8x32xf32, #tpu.memory_space<vmem>>, vector<1x32xf32>
    %22 = vector.broadcast %20 : vector<32x1xf32> to vector<32x32xf32>
    %23 = vector.broadcast %21 : vector<1x32xf32> to vector<32x32xf32>
    %24 = arith.mulf %22, %23 : vector<32x32xf32>
    %25 = arith.addf %19, %24 : vector<32x32xf32>
    %c0_14 = arith.constant 0 : index
    %c4 = arith.constant 4 : index
    %26 = vector.load %arg1[%c0_14, %c4] : memref<32x6xf32, #tpu.memory_space<vmem>>, vector<32x1xf32>
    %c4_15 = arith.constant 4 : index
    %c0_16 = arith.constant 0 : index
    %27 = vector.load %arg3[%c4_15, %c0_16] : memref<8x32xf32, #tpu.memory_space<vmem>>, vector<1x32xf32>
    %28 = vector.broadcast %26 : vector<32x1xf32> to vector<32x32xf32>
    %29 = vector.broadcast %27 : vector<1x32xf32> to vector<32x32xf32>
    %30 = arith.mulf %28, %29 : vector<32x32xf32>
    %31 = arith.addf %25, %30 : vector<32x32xf32>
    %c0_17 = arith.constant 0 : index
    %c5 = arith.constant 5 : index
    %32 = vector.load %arg1[%c0_17, %c5] : memref<32x6xf32, #tpu.memory_space<vmem>>, vector<32x1xf32>
    %c5_18 = arith.constant 5 : index
    %c0_19 = arith.constant 0 : index
    %33 = vector.load %arg3[%c5_18, %c0_19] : memref<8x32xf32, #tpu.memory_space<vmem>>, vector<1x32xf32>
    %34 = vector.broadcast %32 : vector<32x1xf32> to vector<32x32xf32>
    %35 = vector.broadcast %33 : vector<1x32xf32> to vector<32x32xf32>
    %36 = arith.mulf %34, %35 : vector<32x32xf32>
    %37 = arith.addf %31, %36 : vector<32x32xf32>
    %c0_20 = arith.constant 0 : index
    %c0_21 = arith.constant 0 : index
    %38 = vector.load %arg2[%c0_20, %c0_21] : memref<32x2xf32, #tpu.memory_space<vmem>>, vector<32x1xf32>
    %c6 = arith.constant 6 : index
    %c0_22 = arith.constant 0 : index
    %39 = vector.load %arg3[%c6, %c0_22] : memref<8x32xf32, #tpu.memory_space<vmem>>, vector<1x32xf32>
    %40 = vector.broadcast %38 : vector<32x1xf32> to vector<32x32xf32>
    %41 = vector.broadcast %39 : vector<1x32xf32> to vector<32x32xf32>
    %42 = arith.mulf %40, %41 : vector<32x32xf32>
    %43 = arith.addf %37, %42 : vector<32x32xf32>
    %c0_23 = arith.constant 0 : index
    %c1_24 = arith.constant 1 : index
    %44 = vector.load %arg2[%c0_23, %c1_24] : memref<32x2xf32, #tpu.memory_space<vmem>>, vector<32x1xf32>
    %c7 = arith.constant 7 : index
    %c0_25 = arith.constant 0 : index
    %45 = vector.load %arg3[%c7, %c0_25] : memref<8x32xf32, #tpu.memory_space<vmem>>, vector<1x32xf32>
    %46 = vector.broadcast %44 : vector<32x1xf32> to vector<32x32xf32>
    %47 = vector.broadcast %45 : vector<1x32xf32> to vector<32x32xf32>
    %48 = arith.mulf %46, %47 : vector<32x32xf32>
    %49 = arith.addf %43, %48 : vector<32x32xf32>
    %cst = arith.constant 0.000000e+00 : f32
    %50 = vector.broadcast %cst : f32 to vector<32x32xf32>
    %51 = arith.maximumf %49, %50 : vector<32x32xf32>
    %cst_26 = arith.constant dense<0.000000e+00> : vector<32xf32>
    %52 = vector.multi_reduction <add>, %51, %cst_26 [1] : vector<32x32xf32> to vector<32xf32>
    %53 = vector.shape_cast %52 : vector<32xf32> to vector<32x1xf32>
    %cst_27 = arith.constant 3.200000e+01 : f32
    %54 = vector.broadcast %cst_27 : f32 to vector<32x1xf32>
    %55 = arith.divf %53, %54 : vector<32x1xf32>
    %56 = vector.broadcast %55 : vector<32x1xf32> to vector<32x32xf32>
    %57 = arith.subf %51, %56 : vector<32x32xf32>
    %58 = arith.mulf %57, %57 : vector<32x32xf32>
    %cst_28 = arith.constant dense<0.000000e+00> : vector<32xf32>
    %59 = vector.multi_reduction <add>, %58, %cst_28 [1] : vector<32x32xf32> to vector<32xf32>
    %60 = vector.shape_cast %59 : vector<32xf32> to vector<32x1xf32>
    %cst_29 = arith.constant 3.200000e+01 : f32
    %61 = vector.broadcast %cst_29 : f32 to vector<32x1xf32>
    %62 = arith.divf %60, %61 : vector<32x1xf32>
    %cst_30 = arith.constant 9.99999974E-6 : f32
    %63 = vector.broadcast %cst_30 : f32 to vector<32x1xf32>
    %64 = arith.addf %62, %63 : vector<32x1xf32>
    %65 = math.rsqrt %64 : vector<32x1xf32>
    %c0_31 = arith.constant 0 : index
    %c0_32 = arith.constant 0 : index
    %66 = vector.load %arg5[%c0_31, %c0_32] : memref<1x32xf32, #tpu.memory_space<vmem>>, vector<1x32xf32>
    %67 = vector.broadcast %65 : vector<32x1xf32> to vector<32x32xf32>
    %68 = vector.broadcast %66 : vector<1x32xf32> to vector<32x32xf32>
    %69 = arith.mulf %67, %68 : vector<32x32xf32>
    %70 = arith.mulf %57, %69 : vector<32x32xf32>
    %c0_33 = arith.constant 0 : index
    %c0_34 = arith.constant 0 : index
    %71 = vector.load %arg6[%c0_33, %c0_34] : memref<1x32xf32, #tpu.memory_space<vmem>>, vector<1x32xf32>
    %72 = vector.broadcast %71 : vector<1x32xf32> to vector<32x32xf32>
    %73 = arith.addf %70, %72 : vector<32x32xf32>
    %c0_35 = arith.constant 0 : index
    %c0_36 = arith.constant 0 : index
    %74 = vector.load %arg7[%c0_35, %c0_36] : memref<32x128xf32, #tpu.memory_space<vmem>>, vector<32x128xf32>
    %cst_37 = arith.constant dense<0.000000e+00> : vector<32x128xf32>
    %75 = tpu.matmul %73, %74, %cst_37 {dimension_numbers = #tpu.dot_dimension_numbers<[1], [0], [0], [1], [0, 0, 1, 1], [], []>} : vector<32x32xf32>, vector<32x128xf32>, vector<32x128xf32> -> vector<32x128xf32>
    %c0_38 = arith.constant 0 : index
    %c0_39 = arith.constant 0 : index
    %76 = vector.load %arg8[%c0_38, %c0_39] : memref<1x128xf32, #tpu.memory_space<vmem>>, vector<1x128xf32>
    %77 = vector.broadcast %76 : vector<1x128xf32> to vector<32x128xf32>
    %78 = arith.addf %75, %77 : vector<32x128xf32>
    %79 = math.tanh %78 : vector<32x128xf32>
    %c0_40 = arith.constant 0 : index
    %c0_41 = arith.constant 0 : index
    %80 = vector.load %arg9[%c0_40, %c0_41] : memref<32x128xf32, #tpu.memory_space<vmem>>, vector<32x128xf32>
    tpu.vector_store %arg9[%c0_40, %c0_41], %79 {strides = array<i32>} : memref<32x128xf32, #tpu.memory_space<vmem>>, vector<32x128xf32>,
    return
  }
  func.func @transform_0(%arg0: i32) -> (i32, i32) {
    %c0_i32 = arith.constant 0 : i32
    %c0_i32_0 = arith.constant 0 : i32
    return %arg0, %c0_i32 : i32, i32
  }
  func.func @transform_1(%arg0: i32) -> (i32, i32) {
    %c0_i32 = arith.constant 0 : i32
    %c0_i32_0 = arith.constant 0 : i32
    return %arg0, %c0_i32 : i32, i32
  }
  func.func @transform_2(%arg0: i32) -> (i32, i32) {
    %c0_i32 = arith.constant 0 : i32
    %c0_i32_0 = arith.constant 0 : i32
    %c0_i32_1 = arith.constant 0 : i32
    return %c0_i32, %c0_i32_0 : i32, i32
  }
  func.func @transform_3(%arg0: i32) -> (i32, i32) {
    %c0_i32 = arith.constant 0 : i32
    %c0_i32_0 = arith.constant 0 : i32
    %c0_i32_1 = arith.constant 0 : i32
    return %c0_i32, %c0_i32_0 : i32, i32
  }
  func.func @transform_4(%arg0: i32) -> (i32, i32) {
    %c0_i32 = arith.constant 0 : i32
    %c0_i32_0 = arith.constant 0 : i32
    %c0_i32_1 = arith.constant 0 : i32
    return %c0_i32, %c0_i32_0 : i32, i32
  }
  func.func @transform_5(%arg0: i32) -> (i32, i32) {
    %c0_i32 = arith.constant 0 : i32
    %c0_i32_0 = arith.constant 0 : i32
    %c0_i32_1 = arith.constant 0 : i32
    return %c0_i32, %c0_i32_0 : i32, i32
  }
  func.func @transform_6(%arg0: i32) -> (i32, i32) {
    %c0_i32 = arith.constant 0 : i32
    %c0_i32_0 = arith.constant 0 : i32
    %c0_i32_1 = arith.constant 0 : i32
    return %c0_i32, %c0_i32_0 : i32, i32
  }
  func.func @transform_7(%arg0: i32) -> (i32, i32) {
    %c0_i32 = arith.constant 0 : i32
    %c0_i32_0 = arith.constant 0 : i32
    %c0_i32_1 = arith.constant 0 : i32
    return %c0_i32, %c0_i32_0 : i32, i32
  }
  func.func @transform_8(%arg0: i32) -> (i32, i32) {
    %c0_i32 = arith.constant 0 : i32
    %c0_i32_0 = arith.constant 0 : i32
    return %arg0, %c0_i32 : i32, i32
  }
}

module attributes {stable_mosaic.version = 11 : i64} {
  func.func @_mlp_decoder_kernel(%arg0: i32, %arg1: memref<32x6xf32, #tpu.memory_space<vmem>>, %arg2: memref<32x2xf32, #tpu.memory_space<vmem>>, %arg3: memref<8x32xf32, #tpu.memory_space<vmem>>, %arg4: memref<1x32xf32, #tpu.memory_space<vmem>>, %arg5: memref<1x32xf32, #tpu.memory_space<vmem>>, %arg6: memref<1x32xf32, #tpu.memory_space<vmem>>, %arg7: memref<32x128xf32, #tpu.memory_space<vmem>>, %arg8: memref<1x128xf32, #tpu.memory_space<vmem>>, %arg9: memref<32x128xf32, #tpu.memory_space<vmem>>) attributes {dimension_semantics = [#tpu.dimension_semantics<parallel>], iteration_bounds = array<i64: 2>, scalar_prefetch = 0 : i64, scratch_operands = 0 : i64, tpu.core_type = #tpu.core_type<tc>, window_params = [{transform_indices = @transform_0, window_bounds = array<i64: 32, 6>}, {transform_indices = @transform_1, window_bounds = array<i64: 32, 2>}, {pipeline_mode = #tpu.pipeline_mode<synchronous>, transform_indices = @transform_2, window_bounds = array<i64: 8, 32>}, {pipeline_mode = #tpu.pipeline_mode<synchronous>, transform_indices = @transform_3, window_bounds = array<i64: 1, 32>}, {pipeline_mode = #tpu.pipeline_mode<synchronous>, transform_indices = @transform_4, window_bounds = array<i64: 1, 32>}, {pipeline_mode = #tpu.pipeline_mode<synchronous>, transform_indices = @transform_5, window_bounds = array<i64: 1, 32>}, {pipeline_mode = #tpu.pipeline_mode<synchronous>, transform_indices = @transform_6, window_bounds = array<i64: 32, 128>}, {pipeline_mode = #tpu.pipeline_mode<synchronous>, transform_indices = @transform_7, window_bounds = array<i64: 1, 128>}, {transform_indices = @transform_8, window_bounds = array<i64: 32, 128>}]} {
    %c0 = arith.constant 0 : index
    %c0_0 = arith.constant 0 : index
    %0 = vector.load %arg4[%c0, %c0_0] : memref<1x32xf32, #tpu.memory_space<vmem>>, vector<1x32xf32>
    %c0_1 = arith.constant 0 : index
    %c0_2 = arith.constant 0 : index
    %1 = vector.load %arg1[%c0_1, %c0_2] : memref<32x6xf32, #tpu.memory_space<vmem>>, vector<32x1xf32>
    %c0_3 = arith.constant 0 : index
    %c0_4 = arith.constant 0 : index
    %2 = vector.load %arg3[%c0_3, %c0_4] : memref<8x32xf32, #tpu.memory_space<vmem>>, vector<1x32xf32>
    %3 = vector.broadcast %1 : vector<32x1xf32> to vector<32x32xf32>
    %4 = vector.broadcast %2 : vector<1x32xf32> to vector<32x32xf32>
    %5 = arith.mulf %3, %4 : vector<32x32xf32>
    %6 = vector.broadcast %0 : vector<1x32xf32> to vector<32x32xf32>
    %7 = arith.addf %6, %5 : vector<32x32xf32>
    %c0_5 = arith.constant 0 : index
    %c1 = arith.constant 1 : index
    %8 = vector.load %arg1[%c0_5, %c1] : memref<32x6xf32, #tpu.memory_space<vmem>>, vector<32x1xf32>
    %c1_6 = arith.constant 1 : index
    %c0_7 = arith.constant 0 : index
    %9 = vector.load %arg3[%c1_6, %c0_7] : memref<8x32xf32, #tpu.memory_space<vmem>>, vector<1x32xf32>
    %10 = vector.broadcast %8 : vector<32x1xf32> to vector<32x32xf32>
    %11 = vector.broadcast %9 : vector<1x32xf32> to vector<32x32xf32>
    %12 = arith.mulf %10, %11 : vector<32x32xf32>
    %13 = arith.addf %7, %12 : vector<32x32xf32>
    %c0_8 = arith.constant 0 : index
    %c2 = arith.constant 2 : index
    %14 = vector.load %arg1[%c0_8, %c2] : memref<32x6xf32, #tpu.memory_space<vmem>>, vector<32x1xf32>
    %c2_9 = arith.constant 2 : index
    %c0_10 = arith.constant 0 : index
    %15 = vector.load %arg3[%c2_9, %c0_10] : memref<8x32xf32, #tpu.memory_space<vmem>>, vector<1x32xf32>
    %16 = vector.broadcast %14 : vector<32x1xf32> to vector<32x32xf32>
    %17 = vector.broadcast %15 : vector<1x32xf32> to vector<32x32xf32>
    %18 = arith.mulf %16, %17 : vector<32x32xf32>
    %19 = arith.addf %13, %18 : vector<32x32xf32>
    %c0_11 = arith.constant 0 : index
    %c3 = arith.constant 3 : index
    %20 = vector.load %arg1[%c0_11, %c3] : memref<32x6xf32, #tpu.memory_space<vmem>>, vector<32x1xf32>
    %c3_12 = arith.constant 3 : index
    %c0_13 = arith.constant 0 : index
    %21 = vector.load %arg3[%c3_12, %c0_13] : memref<8x32xf32, #tpu.memory_space<vmem>>, vector<1x32xf32>
    %22 = vector.broadcast %20 : vector<32x1xf32> to vector<32x32xf32>
    %23 = vector.broadcast %21 : vector<1x32xf32> to vector<32x32xf32>
    %24 = arith.mulf %22, %23 : vector<32x32xf32>
    %25 = arith.addf %19, %24 : vector<32x32xf32>
    %c0_14 = arith.constant 0 : index
    %c4 = arith.constant 4 : index
    %26 = vector.load %arg1[%c0_14, %c4] : memref<32x6xf32, #tpu.memory_space<vmem>>, vector<32x1xf32>
    %c4_15 = arith.constant 4 : index
    %c0_16 = arith.constant 0 : index
    %27 = vector.load %arg3[%c4_15, %c0_16] : memref<8x32xf32, #tpu.memory_space<vmem>>, vector<1x32xf32>
    %28 = vector.broadcast %26 : vector<32x1xf32> to vector<32x32xf32>
    %29 = vector.broadcast %27 : vector<1x32xf32> to vector<32x32xf32>
    %30 = arith.mulf %28, %29 : vector<32x32xf32>
    %31 = arith.addf %25, %30 : vector<32x32xf32>
    %c0_17 = arith.constant 0 : index
    %c5 = arith.constant 5 : index
    %32 = vector.load %arg1[%c0_17, %c5] : memref<32x6xf32, #tpu.memory_space<vmem>>, vector<32x1xf32>
    %c5_18 = arith.constant 5 : index
    %c0_19 = arith.constant 0 : index
    %33 = vector.load %arg3[%c5_18, %c0_19] : memref<8x32xf32, #tpu.memory_space<vmem>>, vector<1x32xf32>
    %34 = vector.broadcast %32 : vector<32x1xf32> to vector<32x32xf32>
    %35 = vector.broadcast %33 : vector<1x32xf32> to vector<32x32xf32>
    %36 = arith.mulf %34, %35 : vector<32x32xf32>
    %37 = arith.addf %31, %36 : vector<32x32xf32>
    %c0_20 = arith.constant 0 : index
    %c0_21 = arith.constant 0 : index
    %38 = vector.load %arg2[%c0_20, %c0_21] : memref<32x2xf32, #tpu.memory_space<vmem>>, vector<32x1xf32>
    %c6 = arith.constant 6 : index
    %c0_22 = arith.constant 0 : index
    %39 = vector.load %arg3[%c6, %c0_22] : memref<8x32xf32, #tpu.memory_space<vmem>>, vector<1x32xf32>
    %40 = vector.broadcast %38 : vector<32x1xf32> to vector<32x32xf32>
    %41 = vector.broadcast %39 : vector<1x32xf32> to vector<32x32xf32>
    %42 = arith.mulf %40, %41 : vector<32x32xf32>
    %43 = arith.addf %37, %42 : vector<32x32xf32>
    %c0_23 = arith.constant 0 : index
    %c1_24 = arith.constant 1 : index
    %44 = vector.load %arg2[%c0_23, %c1_24] : memref<32x2xf32, #tpu.memory_space<vmem>>, vector<32x1xf32>
    %c7 = arith.constant 7 : index
    %c0_25 = arith.constant 0 : index
    %45 = vector.load %arg3[%c7, %c0_25] : memref<8x32xf32, #tpu.memory_space<vmem>>, vector<1x32xf32>
    %46 = vector.broadcast %44 : vector<32x1xf32> to vector<32x32xf32>
    %47 = vector.broadcast %45 : vector<1x32xf32> to vector<32x32xf32>
    %48 = arith.mulf %46, %47 : vector<32x32xf32>
    %49 = arith.addf %43, %48 : vector<32x32xf32>
    %cst = arith.constant 0.000000e+00 : f32
    %50 = vector.broadcast %cst : f32 to vector<32x32xf32>
    %51 = arith.maximumf %49, %50 : vector<32x32xf32>
    %cst_26 = arith.constant dense<0.000000e+00> : vector<32xf32>
    %52 = vector.multi_reduction <add>, %51, %cst_26 [1] : vector<32x32xf32> to vector<32xf32>
    %53 = vector.shape_cast %52 : vector<32xf32> to vector<32x1xf32>
    %cst_27 = arith.constant 3.200000e+01 : f32
    %54 = vector.broadcast %cst_27 : f32 to vector<32x1xf32>
    %55 = arith.divf %53, %54 : vector<32x1xf32>
    %56 = vector.broadcast %55 : vector<32x1xf32> to vector<32x32xf32>
    %57 = arith.subf %51, %56 : vector<32x32xf32>
    %58 = arith.mulf %57, %57 : vector<32x32xf32>
    %cst_28 = arith.constant dense<0.000000e+00> : vector<32xf32>
    %59 = vector.multi_reduction <add>, %58, %cst_28 [1] : vector<32x32xf32> to vector<32xf32>
    %60 = vector.shape_cast %59 : vector<32xf32> to vector<32x1xf32>
    %cst_29 = arith.constant 3.200000e+01 : f32
    %61 = vector.broadcast %cst_29 : f32 to vector<32x1xf32>
    %62 = arith.divf %60, %61 : vector<32x1xf32>
    %cst_30 = arith.constant 9.99999974E-6 : f32
    %63 = vector.broadcast %cst_30 : f32 to vector<32x1xf32>
    %64 = arith.addf %62, %63 : vector<32x1xf32>
    %65 = math.rsqrt %64 : vector<32x1xf32>
    %c0_31 = arith.constant 0 : index
    %c0_32 = arith.constant 0 : index
    %66 = vector.load %arg5[%c0_31, %c0_32] : memref<1x32xf32, #tpu.memory_space<vmem>>, vector<1x32xf32>
    %67 = vector.broadcast %65 : vector<32x1xf32> to vector<32x32xf32>
    %68 = vector.broadcast %66 : vector<1x32xf32> to vector<32x32xf32>
    %69 = arith.mulf %67, %68 : vector<32x32xf32>
    %70 = arith.mulf %57, %69 : vector<32x32xf32>
    %c0_33 = arith.constant 0 : index
    %c0_34 = arith.constant 0 : index
    %71 = vector.load %arg6[%c0_33, %c0_34] : memref<1x32xf32, #tpu.memory_space<vmem>>, vector<1x32xf32>
    %72 = vector.broadcast %71 : vector<1x32xf32> to vector<32x32xf32>
    %73 = arith.addf %70, %72 : vector<32x32xf32>
    %c0_35 = arith.constant 0 : index
    %c0_36 = arith.constant 0 : index
    %74 = vector.load %arg7[%c0_35, %c0_36] : memref<32x128xf32, #tpu.memory_space<vmem>>, vector<32x128xf32>
    %cst_37 = arith.constant dense<0.000000e+00> : vector<32x128xf32>
    %75 = tpu.matmul %73, %74, %cst_37 {dimension_numbers = #tpu.dot_dimension_numbers<[1], [0], [0], [1], [0, 0, 1, 1], [], []>} : vector<32x32xf32>, vector<32x128xf32>, vector<32x128xf32> -> vector<32x128xf32>
    %c0_38 = arith.constant 0 : index
    %c0_39 = arith.constant 0 : index
    %76 = vector.load %arg8[%c0_38, %c0_39] : memref<1x128xf32, #tpu.memory_space<vmem>>, vector<1x128xf32>
    %77 = vector.broadcast %76 : vector<1x128xf32> to vector<32x128xf32>
    %78 = arith.addf %75, %77 : vector<32x128xf32>
    %79 = math.tanh %78 : vector<32x128xf32>
    %c0_40 = arith.constant 0 : index
    %c0_41 = arith.constant 0 : index
    %80 = vector.load %arg9[%c0_40, %c0_41] : memref<32x128xf32, #tpu.memory_space<vmem>>, vector<32x128xf32>
    tpu.vector_store %arg9[%c0_40, %c0_41], %79 {strides = array<i32>} : memref<32x128xf32, #tpu.memory_space<vmem>>, vector<32x128xf32>,
    return
  }
  func.func @transform_0(%arg0: i32) -> (i32, i32) {
    %c0_i32 = arith.constant 0 : i32
    %c0_i32_0 = arith.constant 0 : i32
    return %arg0, %c0_i32 : i32, i32
  }
  func.func @transform_1(%arg0: i32) -> (i32, i32) {
    %c0_i32 = arith.constant 0 : i32
    %c0_i32_0 = arith.constant 0 : i32
    return %arg0, %c0_i32 : i32, i32
  }
  func.func @transform_2(%arg0: i32) -> (i32, i32) {
    %c0_i32 = arith.constant 0 : i32
    %c0_i32_0 = arith.constant 0 : i32
    %c0_i32_1 = arith.constant 0 : i32
    return %c0_i32, %c0_i32_0 : i32, i32
  }
  func.func @transform_3(%arg0: i32) -> (i32, i32) {
    %c0_i32 = arith.constant 0 : i32
    %c0_i32_0 = arith.constant 0 : i32
    %c0_i32_1 = arith.constant 0 : i32
    return %c0_i32, %c0_i32_0 : i32, i32
  }
  func.func @transform_4(%arg0: i32) -> (i32, i32) {
    %c0_i32 = arith.constant 0 : i32
    %c0_i32_0 = arith.constant 0 : i32
    %c0_i32_1 = arith.constant 0 : i32
    return %c0_i32, %c0_i32_0 : i32, i32
  }
  func.func @transform_5(%arg0: i32) -> (i32, i32) {
    %c0_i32 = arith.constant 0 : i32
    %c0_i32_0 = arith.constant 0 : i32
    %c0_i32_1 = arith.constant 0 : i32
    return %c0_i32, %c0_i32_0 : i32, i32
  }
  func.func @transform_6(%arg0: i32) -> (i32, i32) {
    %c0_i32 = arith.constant 0 : i32
    %c0_i32_0 = arith.constant 0 : i32
    %c0_i32_1 = arith.constant 0 : i32
    return %c0_i32, %c0_i32_0 : i32, i32
  }
  func.func @transform_7(%arg0: i32) -> (i32, i32) {
    %c0_i32 = arith.constant 0 : i32
    %c0_i32_0 = arith.constant 0 : i32
    %c0_i32_1 = arith.constant 0 : i32
    return %c0_i32, %c0_i32_0 : i32, i32
  }
  func.func @transform_8(%arg0: i32) -> (i32, i32) {
    %c0_i32 = arith.constant 0 : i32
    %c0_i32_0 = arith.constant 0 : i32
    return %arg0, %c0_i32 : i32, i32
  }
}

</mosaic_0001>

<llo_original>
// kernel: tpu_custom_call.1
$region0: #{tpu_custom_call.1}
  #allocation0 [shape = 'u32[]', space=smem, size = 0x4, offset = 0x4, fixed_abs, tag = 'smem constant byte address 0x4 - core index']
  #allocation1 [shape = 'u32[144,128]{1,0:T(1,128)}', space=vmem, size = 0x12000, scoped, tag = 'internal scratch']
  %s0 = inlined_call_operand.vmem [shape: f32[64,6], index: 0, kind: input, shape index: {}]
  %s1 = inlined_call_operand.vmem [shape: f32[64,2], index: 1, kind: input, shape index: {}]
  %s2 = inlined_call_operand.vmem [shape: f32[8,32], index: 2, kind: input, shape index: {}]
  %s3 = inlined_call_operand.vmem [shape: f32[1,32], index: 3, kind: input, shape index: {}]
  %s4 = inlined_call_operand.vmem [shape: f32[1,32], index: 4, kind: input, shape index: {}]
  %s5 = inlined_call_operand.vmem [shape: f32[1,32], index: 5, kind: input, shape index: {}]
  %s6 = inlined_call_operand.vmem [shape: f32[32,128], index: 6, kind: input, shape index: {}]
  %s7 = inlined_call_operand.vmem [shape: f32[1,128], index: 7, kind: input, shape index: {}]
  %s8 = inlined_call_operand.hbm [shape: f32[64,128], index: 8, kind: output, shape index: {}]
  %s9 = sld [smem:[#allocation0]]
  $region65: #{tpu_custom_call.1} parent=0
    _
  %s11 = ssub.s32 1, %s9
  %s12 = scalar_select 0, %s11, %s9
  $region1: #{tpu_custom_call.1} parent=0
    #allocation2 [shape = 'u8[32768]{0}', space=vmem, size = 0x8000, scoped, tag = 'output window, operand 0']
    #allocation3 [shape = 's32[2]{0}', space=sflag, size = 0x8, scoped, tag = 'scoped memory for tpu_custom_call.1']
    %13 = vsyncpa [#allocation3], 0
    %s14 = scalar_lea.sflag [#allocation3], 1
    %15 = vsyncpa %s14, 0
    loop: start=0, step=1, limit=4
    $region2: #{tpu_custom_call.1} parent=1 // loop_pre_header
      _
    $region3: #{tpu_custom_call.1} parent=1 // loop_header
      %s17 = sphi 0, %s21
      %p18 = scmp.ge.s32.totalorder %s17, 4
      %s27 = sphi 0, %s29
      %s30 = sphi 0, %s27
      %s31 = sphi 0, %s30
      %s47 = sphi 0, %s31
      %s53 = sphi 0, %s55
      %s56 = sphi 0, %s53
      %s57 = sphi 0, %s56
      %s73 = sphi 0, %s57
      %s77 = sphi 0, %s77
      %s79 = sphi 0, %s77
      %s80 = sphi 0, %s79
      %s94 = sphi 0, %s80
      %s98 = sphi 0, %s98
      %s100 = sphi 0, %s98
      %s101 = sphi 0, %s100
      %s115 = sphi 0, %s101
      %s119 = sphi 0, %s119
      %s121 = sphi 0, %s119
      %s122 = sphi 0, %s121
      %s136 = sphi 0, %s122
      %s140 = sphi 0, %s140
      %s142 = sphi 0, %s140
      %s143 = sphi 0, %s142
      %s157 = sphi 0, %s143
      %s161 = sphi 0, %s161
      %s163 = sphi 0, %s161
      %s164 = sphi 0, %s163
      %s178 = sphi 0, %s164
      %s182 = sphi 0, %s182
      %s184 = sphi 0, %s182
      %s185 = sphi 0, %s184
      %s199 = sphi 0, %s185
      %s205 = sphi 0, %s207
      %s208 = sphi 0, %s205
      %s209 = sphi 0, %s208
      %s225 = sphi 0, %s209
    $region4: #{tpu_custom_call.1} parent=1 // loop_header_branch
      %20 = sbr.rel (%p18) target = $region8
    $region5: #{tpu_custom_call.1} parent=1 // loop_body
      %s22 = ssub.s32 %s17, 1
      %s23 = ssub.s32 %s17, 2
      %s24 = sadd.s32 %s17, 1
      %s25 = ssub.s32 %s17, %s24
      %p26 = scmp.eq.s32.totalorder %s25, 0
      %s28 = sadd.s32 %s27, 1
      %s29 = scalar_select %p26, %s27, %s28
      %p32 = pneg %p26
      %p33 = scmp.eq.s32.totalorder %s17, 1
      %p34 = por %p32, %p33
      %p35 = scmp.ne.s32.totalorder %s27, %s30
      %p36 = scmp.eq.s32.totalorder %s17, 0
      %p37 = por %p35, %p36
      %p38 = scmp.ne.s32.totalorder %s27, %s30
      %p39 = scmp.eq.s32.totalorder %s22, 1
      %p40 = por %p38, %p39
      %p41 = scmp.ne.s32.totalorder %s30, %s31
      %p42 = scmp.eq.s32.totalorder %s22, 0
      %p43 = por %p41, %p42
      %p44 = scmp.ne.s32.totalorder %s30, %s31
      %p45 = scmp.eq.s32.totalorder %s23, 1
      %p46 = por %p44, %p45
      %p48 = scmp.ne.s32.totalorder %s31, %s47
      %p49 = scmp.eq.s32.totalorder %s23, 0
      %p50 = por %p48, %p49
      %s51 = ssub.s32 %s17, %s24
      %p52 = scmp.eq.s32.totalorder %s51, 0
      %s54 = sadd.s32 %s53, 1
      %s55 = scalar_select %p52, %s53, %s54
      %p58 = pneg %p52
      %p59 = scmp.eq.s32.totalorder %s17, 1
      %p60 = por %p58, %p59
      %p61 = scmp.ne.s32.totalorder %s53, %s56
      %p62 = scmp.eq.s32.totalorder %s17, 0
      %p63 = por %p61, %p62
      %p64 = scmp.ne.s32.totalorder %s53, %s56
      %p65 = scmp.eq.s32.totalorder %s22, 1
      %p66 = por %p64, %p65
      %p67 = scmp.ne.s32.totalorder %s56, %s57
      %p68 = scmp.eq.s32.totalorder %s22, 0
      %p69 = por %p67, %p68
      %p70 = scmp.ne.s32.totalorder %s56, %s57
      %p71 = scmp.eq.s32.totalorder %s23, 1
      %p72 = por %p70, %p71
      %p74 = scmp.ne.s32.totalorder %s57, %s73
      %p75 = scmp.eq.s32.totalorder %s23, 0
      %p76 = por %p74, %p75
      %s78 = sadd.s32 %s77, 1
      %p81 = scmp.eq.s32.totalorder %s17, 1
      %p82 = scmp.ne.s32.totalorder %s77, %s79
      %p83 = scmp.eq.s32.totalorder %s17, 0
      %p84 = por %p82, %p83
      %p85 = scmp.ne.s32.totalorder %s77, %s79
      %p86 = scmp.eq.s32.totalorder %s22, 1
      %p87 = por %p85, %p86
      %p88 = scmp.ne.s32.totalorder %s79, %s80
      %p89 = scmp.eq.s32.totalorder %s22, 0
      %p90 = por %p88, %p89
      %p91 = scmp.ne.s32.totalorder %s79, %s80
      %p92 = scmp.eq.s32.totalorder %s23, 1
      %p93 = por %p91, %p92
      %p95 = scmp.ne.s32.totalorder %s80, %s94
      %p96 = scmp.eq.s32.totalorder %s23, 0
      %p97 = por %p95, %p96
      %s99 = sadd.s32 %s98, 1
      %p102 = scmp.eq.s32.totalorder %s17, 1
      %p103 = scmp.ne.s32.totalorder %s98, %s100
      %p104 = scmp.eq.s32.totalorder %s17, 0
      %p105 = por %p103, %p104
      %p106 = scmp.ne.s32.totalorder %s98, %s100
      %p107 = scmp.eq.s32.totalorder %s22, 1
      %p108 = por %p106, %p107
      %p109 = scmp.ne.s32.totalorder %s100, %s101
      %p110 = scmp.eq.s32.totalorder %s22, 0
      %p111 = por %p109, %p110
      %p112 = scmp.ne.s32.totalorder %s100, %s101
      %p113 = scmp.eq.s32.totalorder %s23, 1
      %p114 = por %p112, %p113
      %p116 = scmp.ne.s32.totalorder %s101, %s115
      %p117 = scmp.eq.s32.totalorder %s23, 0
      %p118 = por %p116, %p117
      %s120 = sadd.s32 %s119, 1
      %p123 = scmp.eq.s32.totalorder %s17, 1
      %p124 = scmp.ne.s32.totalorder %s119, %s121
      %p125 = scmp.eq.s32.totalorder %s17, 0
      %p126 = por %p124, %p125
      %p127 = scmp.ne.s32.totalorder %s119, %s121
      %p128 = scmp.eq.s32.totalorder %s22, 1
      %p129 = por %p127, %p128
      %p130 = scmp.ne.s32.totalorder %s121, %s122
      %p131 = scmp.eq.s32.totalorder %s22, 0
      %p132 = por %p130, %p131
      %p133 = scmp.ne.s32.totalorder %s121, %s122
      %p134 = scmp.eq.s32.totalorder %s23, 1
      %p135 = por %p133, %p134
      %p137 = scmp.ne.s32.totalorder %s122, %s136
      %p138 = scmp.eq.s32.totalorder %s23, 0
      %p139 = por %p137, %p138
      %s141 = sadd.s32 %s140, 1
      %p144 = scmp.eq.s32.totalorder %s17, 1
      %p145 = scmp.ne.s32.totalorder %s140, %s142
      %p146 = scmp.eq.s32.totalorder %s17, 0
      %p147 = por %p145, %p146
      %p148 = scmp.ne.s32.totalorder %s140, %s142
      %p149 = scmp.eq.s32.totalorder %s22, 1
      %p150 = por %p148, %p149
      %p151 = scmp.ne.s32.totalorder %s142, %s143
      %p152 = scmp.eq.s32.totalorder %s22, 0
      %p153 = por %p151, %p152
      %p154 = scmp.ne.s32.totalorder %s142, %s143
      %p155 = scmp.eq.s32.totalorder %s23, 1
      %p156 = por %p154, %p155
      %p158 = scmp.ne.s32.totalorder %s143, %s157
      %p159 = scmp.eq.s32.totalorder %s23, 0
      %p160 = por %p158, %p159
      %s162 = sadd.s32 %s161, 1
      %p165 = scmp.eq.s32.totalorder %s17, 1
      %p166 = scmp.ne.s32.totalorder %s161, %s163
      %p167 = scmp.eq.s32.totalorder %s17, 0
      %p168 = por %p166, %p167
      %p169 = scmp.ne.s32.totalorder %s161, %s163
      %p170 = scmp.eq.s32.totalorder %s22, 1
      %p171 = por %p169, %p170
      %p172 = scmp.ne.s32.totalorder %s163, %s164
      %p173 = scmp.eq.s32.totalorder %s22, 0
      %p174 = por %p172, %p173
      %p175 = scmp.ne.s32.totalorder %s163, %s164
      %p176 = scmp.eq.s32.totalorder %s23, 1
      %p177 = por %p175, %p176
      %p179 = scmp.ne.s32.totalorder %s164, %s178
      %p180 = scmp.eq.s32.totalorder %s23, 0
      %p181 = por %p179, %p180
      %s183 = sadd.s32 %s182, 1
      %p186 = scmp.eq.s32.totalorder %s17, 1
      %p187 = scmp.ne.s32.totalorder %s182, %s184
      %p188 = scmp.eq.s32.totalorder %s17, 0
      %p189 = por %p187, %p188
      %p190 = scmp.ne.s32.totalorder %s182, %s184
      %p191 = scmp.eq.s32.totalorder %s22, 1
      %p192 = por %p190, %p191
      %p193 = scmp.ne.s32.totalorder %s184, %s185
      %p194 = scmp.eq.s32.totalorder %s22, 0
      %p195 = por %p193, %p194
      %p196 = scmp.ne.s32.totalorder %s184, %s185
      %p197 = scmp.eq.s32.totalorder %s23, 1
      %p198 = por %p196, %p197
      %p200 = scmp.ne.s32.totalorder %s185, %s199
      %p201 = scmp.eq.s32.totalorder %s23, 0
      %p202 = por %p200, %p201
      %s203 = ssub.s32 %s17, %s24
      %p204 = scmp.eq.s32.totalorder %s203, 0
      %s206 = sadd.s32 %s205, 1
      %s207 = scalar_select %p204, %s205, %s206
      %p210 = pneg %p204
      %p211 = scmp.eq.s32.totalorder %s17, 1
      %p212 = por %p210, %p211
      %p213 = scmp.ne.s32.totalorder %s205, %s208
      %p214 = scmp.eq.s32.totalorder %s17, 0
      %p215 = por %p213, %p214
      %p216 = scmp.ne.s32.totalorder %s205, %s208
      %p217 = scmp.eq.s32.totalorder %s22, 1
      %p218 = por %p216, %p217
      %p219 = scmp.ne.s32.totalorder %s208, %s209
      %p220 = scmp.eq.s32.totalorder %s22, 0
      %p221 = por %p219, %p220
      %p222 = scmp.ne.s32.totalorder %s208, %s209
      %p223 = scmp.eq.s32.totalorder %s23, 1
      %p224 = por %p222, %p223
      %p226 = scmp.ne.s32.totalorder %s209, %s225
      %p227 = scmp.eq.s32.totalorder %s23, 0
      %p228 = por %p226, %p227
      %p229 = scmp.le.s32.totalorder 1, %s17
      %p230 = scmp.lt.s32.totalorder %s17, 3
      %p231 = pnand %p229, %p230
      %p232 = pneg %p231
      // Predicated region
      $region9: #{tpu_custom_call.1} parent=5 // pred_check
        _
      $region10: #{tpu_custom_call.1} parent=5 // pred_check_branch
        %234 = sbr.rel (%p231) target = $region12
      $region11: #{tpu_custom_call.1} parent=5 // pred_region
        %s235 = ssub.s32 %s17, 1
        // Predicated region
        $region13: #{tpu_custom_call.1} parent=11 // pred_check
          %p236 = pneg %p90
        $region14: #{tpu_custom_call.1} parent=11 // pred_check_branch
          %238 = sbr.rel (%p236) target = $region16
        $region15: #{tpu_custom_call.1} parent=11 // pred_region
          _
        $region16: #{tpu_custom_call.1} parent=11 // pred_fallthru
          _
        // Predicated region
        $region17: #{tpu_custom_call.1} parent=11 // pred_check
          %p239 = pneg %p111
        $region18: #{tpu_custom_call.1} parent=11 // pred_check_branch
          %241 = sbr.rel (%p239) target = $region20
        $region19: #{tpu_custom_call.1} parent=11 // pred_region
          _
        $region20: #{tpu_custom_call.1} parent=11 // pred_fallthru
          _
        // Predicated region
        $region21: #{tpu_custom_call.1} parent=11 // pred_check
          %p242 = pneg %p132
        $region22: #{tpu_custom_call.1} parent=11 // pred_check_branch
          %244 = sbr.rel (%p242) target = $region24
        $region23: #{tpu_custom_call.1} parent=11 // pred_region
          _
        $region24: #{tpu_custom_call.1} parent=11 // pred_fallthru
          _
        // Predicated region
        $region25: #{tpu_custom_call.1} parent=11 // pred_check
          %p245 = pneg %p153
        $region26: #{tpu_custom_call.1} parent=11 // pred_check_branch
          %247 = sbr.rel (%p245) target = $region28
        $region27: #{tpu_custom_call.1} parent=11 // pred_region
          _
        $region28: #{tpu_custom_call.1} parent=11 // pred_fallthru
          _
        // Predicated region
        $region29: #{tpu_custom_call.1} parent=11 // pred_check
          %p248 = pneg %p174
        $region30: #{tpu_custom_call.1} parent=11 // pred_check_branch
          %250 = sbr.rel (%p248) target = $region32
        $region31: #{tpu_custom_call.1} parent=11 // pred_region
          _
        $region32: #{tpu_custom_call.1} parent=11 // pred_fallthru
          _
        // Predicated region
        $region33: #{tpu_custom_call.1} parent=11 // pred_check
          %p251 = pneg %p195
        $region34: #{tpu_custom_call.1} parent=11 // pred_check_branch
          %253 = sbr.rel (%p251) target = $region36
        $region35: #{tpu_custom_call.1} parent=11 // pred_region
          _
        $region36: #{tpu_custom_call.1} parent=11 // pred_fallthru
          _
      $region12: #{tpu_custom_call.1} parent=5 // pred_fallthru
        _
      %p254 = scmp.lt.s32.totalorder %s17, 2
      // Predicated region
      $region37: #{tpu_custom_call.1} parent=5 // pred_check
        %p255 = pneg %p254
      $region38: #{tpu_custom_call.1} parent=5 // pred_check_branch
        %257 = sbr.rel (%p255) target = $region40
      $region39: #{tpu_custom_call.1} parent=5 // pred_region
        // Predicated region
        $region41: #{tpu_custom_call.1} parent=39 // pred_check
          %p258 = pneg %p37
        $region42: #{tpu_custom_call.1} parent=39 // pred_check_branch
          %260 = sbr.rel (%p258) target = $region44
        $region43: #{tpu_custom_call.1} parent=39 // pred_region
          %s261 = smul.u32 4, %s17
          %p262 = scmp.lt.s32.totalorder %s261, 7
          %s263 = scalar_select %p262, %s261, 7
          %s264 = smul.addr %s263, 8
          %s265 = scalar_lea.vmem %s0, %s264
          %s266 = smul.u32 4, %s17
        $region44: #{tpu_custom_call.1} parent=39 // pred_fallthru
          _
        // Predicated region
        $region45: #{tpu_custom_call.1} parent=39 // pred_check
          %p267 = pneg %p63
        $region46: #{tpu_custom_call.1} parent=39 // pred_check_branch
          %269 = sbr.rel (%p267) target = $region48
        $region47: #{tpu_custom_call.1} parent=39 // pred_region
          %s270 = smul.u32 4, %s17
          %p271 = scmp.lt.s32.totalorder %s270, 7
          %s272 = scalar_select %p271, %s270, 7
          %s273 = smul.addr %s272, 8
          %s274 = scalar_lea.vmem %s1, %s273
          %s275 = smul.u32 4, %s17
        $region48: #{tpu_custom_call.1} parent=39 // pred_fallthru
          _
      $region40: #{tpu_custom_call.1} parent=5 // pred_fallthru
        _
      %p276 = scmp.le.s32.totalorder 1, %s17
      %p277 = scmp.lt.s32.totalorder %s17, 3
      %p278 = pnand %p276, %p277
      %p279 = pneg %p278
      // Predicated region
      $region49: #{tpu_custom_call.1} parent=5 // pred_check
        _
      $region50: #{tpu_custom_call.1} parent=5 // pred_check_branch
        %281 = sbr.rel (%p278) target = $region52
      $region51: #{tpu_custom_call.1} parent=5 // pred_region
        %s282 = ssub.s32 %s17, 1
        %s283 = smul.u32 4, %s22
        %p284 = scmp.lt.s32.totalorder %s283, 7
        %s285 = scalar_select %p284, %s283, 7
        %s286 = smul.addr %s285, 8
        %s287 = scalar_lea.vmem %s0, %s286
        %p288 = pneg %p43
        %p289 = pneg %p40
        %s290 = smul.u32 4, %s22
        %p291 = scmp.lt.s32.totalorder %s290, 7
        %s292 = scalar_select %p291, %s290, 7
        %s293 = smul.addr %s292, 8
        %s294 = scalar_lea.vmem %s1, %s293
        %p295 = pneg %p69
        %p296 = pneg %p66
        %p297 = pneg %p90
        %p298 = pneg %p87
        %p299 = pneg %p111
        %p300 = pneg %p108
        %p301 = pneg %p132
        %p302 = pneg %p129
        %p303 = pneg %p153
        %p304 = pneg %p150
        %p305 = pneg %p174
        %p306 = pneg %p171
        %p307 = pneg %p195
        %p308 = pneg %p192
        %p309 = pneg %p221
        %p310 = pneg %p218
        %s311 = sand.u32 %s208, 1
        %s312 = scalar_lea.sflag [#allocation3], %s311
        %s313 = sand.u32 %s208, 1
        %s314 = smul.addr %s313, 32
        %s315 = scalar_lea.vmem [#allocation2], %s314
        %s316 = smul.u32 4, %s22
        %p317 = scmp.lt.s32.totalorder %s316, 7
        %s318 = scalar_select %p317, %s316, 7
        %s319 = smul.addr %s318, 8
        %s320 = scalar_lea.vmem %s0, %s319
        %s321 = smul.u32 4, %s22
        %s322 = smul.u32 4, %s22
        %p323 = scmp.lt.s32.totalorder %s322, 7
        %s324 = scalar_select %p323, %s322, 7
        %s325 = smul.addr %s324, 8
        %s326 = scalar_lea.vmem %s1, %s325
        %s327 = smul.u32 4, %s22
        %s328 = smul.u32 4, %s22
        %v329 = vld [vmem:[%s3] sm:$0x1]
        %v330 = vld [vmem:[%s320] sm:$0xff]
        %v331 = vld [vmem:[%s320 + $0x8] sm:$0xff]
        %v332 = vld [vmem:[%s320 + $0x10] sm:$0xff]
        %v333 = vld [vmem:[%s320 + $0x18] sm:$0xff]
        %v334 = vld [vmem:[%s2] sm:$0x1]
        %336 = vset.pattern.permute.xlu0 0
        %337 = vperm.xlu0 %336, %v330
        %v338 = vpop.permute.xlu0 %337
        %341 = vset.pattern.permute.xlu0 0
        %342 = vperm.xlu0 %341, %v331
        %v343 = vpop.permute.xlu0 %342
        %346 = vset.pattern.permute.xlu0 0
        %347 = vperm.xlu0 %346, %v332
        %v348 = vpop.permute.xlu0 %347
        %351 = vset.pattern.permute.xlu0 0
        %352 = vperm.xlu0 %351, %v333
        %v353 = vpop.permute.xlu0 %352
        %v355 = vlaneseq
        %v356 = vshrl.u32 %v355, 7
        %v357 = vsub.s32 0, %v356
        %v358 = vrot.slane %v334, %v357
        %v359 = vmul.f32 %v338, %v358
        %v360 = vmul.f32 %v343, %v358
        %v361 = vmul.f32 %v348, %v358
        %v362 = vmul.f32 %v353, %v358
        %v364 = vlaneseq
        %v365 = vshrl.u32 %v364, 7
        %v366 = vsub.s32 0, %v365
        %v367 = vrot.slane %v329, %v366
        %v369 = vadd.f32 %v367, %v359
        %v370 = vadd.f32 %v367, %v360
        %v371 = vadd.f32 %v367, %v361
        %v372 = vadd.f32 %v367, %v362
        %v373 = vld [vmem:[%s2 + $0x1] sm:$0x1]
        %374 = vset.pattern.permute.xlu0 1
        %375 = vperm.xlu0 %374, %v330
        %v376 = vpop.permute.xlu0 %375
        %378 = vset.pattern.permute.xlu0 1
        %379 = vperm.xlu0 %378, %v331
        %v380 = vpop.permute.xlu0 %379
        %382 = vset.pattern.permute.xlu0 1
        %383 = vperm.xlu0 %382, %v332
        %v384 = vpop.permute.xlu0 %383
        %386 = vset.pattern.permute.xlu0 1
        %387 = vperm.xlu0 %386, %v333
        %v388 = vpop.permute.xlu0 %387
        %v390 = vlaneseq
        %v391 = vshrl.u32 %v390, 7
        %v392 = vsub.s32 0, %v391
        %v393 = vrot.slane %v373, %v392
        %v394 = vmul.f32 %v376, %v393
        %v395 = vmul.f32 %v380, %v393
        %v396 = vmul.f32 %v384, %v393
        %v397 = vmul.f32 %v388, %v393
        %v398 = vadd.f32 %v369, %v394
        %v399 = vadd.f32 %v370, %v395
        %v400 = vadd.f32 %v371, %v396
        %v401 = vadd.f32 %v372, %v397
        %v402 = vld [vmem:[%s2 + $0x2] sm:$0x1]
        %403 = vset.pattern.permute.xlu0 2
        %404 = vperm.xlu0 %403, %v330
        %v405 = vpop.permute.xlu0 %404
        %407 = vset.pattern.permute.xlu0 2
        %408 = vperm.xlu0 %407, %v331
        %v409 = vpop.permute.xlu0 %408
        %411 = vset.pattern.permute.xlu0 2
        %412 = vperm.xlu0 %411, %v332
        %v413 = vpop.permute.xlu0 %412
        %415 = vset.pattern.permute.xlu0 2
        %416 = vperm.xlu0 %415, %v333
        %v417 = vpop.permute.xlu0 %416
        %v419 = vlaneseq
        %v420 = vshrl.u32 %v419, 7
        %v421 = vsub.s32 0, %v420
        %v422 = vrot.slane %v402, %v421
        %v423 = vmul.f32 %v405, %v422
        %v424 = vmul.f32 %v409, %v422
        %v425 = vmul.f32 %v413, %v422
        %v426 = vmul.f32 %v417, %v422
        %v427 = vadd.f32 %v398, %v423
        %v428 = vadd.f32 %v399, %v424
        %v429 = vadd.f32 %v400, %v425
        %v430 = vadd.f32 %v401, %v426
        %v431 = vld [vmem:[%s2 + $0x3] sm:$0x1]
        %432 = vset.pattern.permute.xlu0 3
        %433 = vperm.xlu0 %432, %v330
        %v434 = vpop.permute.xlu0 %433
        %436 = vset.pattern.permute.xlu0 3
        %437 = vperm.xlu0 %436, %v331
        %v438 = vpop.permute.xlu0 %437
        %440 = vset.pattern.permute.xlu0 3
        %441 = vperm.xlu0 %440, %v332
        %v442 = vpop.permute.xlu0 %441
        %444 = vset.pattern.permute.xlu0 3
        %445 = vperm.xlu0 %444, %v333
        %v446 = vpop.permute.xlu0 %445
        %v448 = vlaneseq
        %v449 = vshrl.u32 %v448, 7
        %v450 = vsub.s32 0, %v449
        %v451 = vrot.slane %v431, %v450
        %v452 = vmul.f32 %v434, %v451
        %v453 = vmul.f32 %v438, %v451
        %v454 = vmul.f32 %v442, %v451
        %v455 = vmul.f32 %v446, %v451
        %v456 = vadd.f32 %v427, %v452
        %v457 = vadd.f32 %v428, %v453
        %v458 = vadd.f32 %v429, %v454
        %v459 = vadd.f32 %v430, %v455
        %v460 = vld [vmem:[%s2 + $0x4] sm:$0x1]
        %461 = vset.pattern.permute.xlu0 4
        %462 = vperm.xlu0 %461, %v330
        %v463 = vpop.permute.xlu0 %462
        %465 = vset.pattern.permute.xlu0 4
        %466 = vperm.xlu0 %465, %v331
        %v467 = vpop.permute.xlu0 %466
        %469 = vset.pattern.permute.xlu0 4
        %470 = vperm.xlu0 %469, %v332
        %v471 = vpop.permute.xlu0 %470
        %473 = vset.pattern.permute.xlu0 4
        %474 = vperm.xlu0 %473, %v333
        %v475 = vpop.permute.xlu0 %474
        %v477 = vlaneseq
        %v478 = vshrl.u32 %v477, 7
        %v479 = vsub.s32 0, %v478
        %v480 = vrot.slane %v460, %v479
        %v481 = vmul.f32 %v463, %v480
        %v482 = vmul.f32 %v467, %v480
        %v483 = vmul.f32 %v471, %v480
        %v484 = vmul.f32 %v475, %v480
        %v485 = vadd.f32 %v456, %v481
        %v486 = vadd.f32 %v457, %v482
        %v487 = vadd.f32 %v458, %v483
        %v488 = vadd.f32 %v459, %v484
        %v489 = vld [vmem:[%s2 + $0x5] sm:$0x1]
        %490 = vset.pattern.permute.xlu0 5
        %491 = vperm.xlu0 %490, %v330
        %v492 = vpop.permute.xlu0 %491
        %494 = vset.pattern.permute.xlu0 5
        %495 = vperm.xlu0 %494, %v331
        %v496 = vpop.permute.xlu0 %495
        %498 = vset.pattern.permute.xlu0 5
        %499 = vperm.xlu0 %498, %v332
        %v500 = vpop.permute.xlu0 %499
        %502 = vset.pattern.permute.xlu0 5
        %503 = vperm.xlu0 %502, %v333
        %v504 = vpop.permute.xlu0 %503
        %v506 = vlaneseq
        %v507 = vshrl.u32 %v506, 7
        %v508 = vsub.s32 0, %v507
        %v509 = vrot.slane %v489, %v508
        %v510 = vmul.f32 %v492, %v509
        %v511 = vmul.f32 %v496, %v509
        %v512 = vmul.f32 %v500, %v509
        %v513 = vmul.f32 %v504, %v509
        %v514 = vadd.f32 %v485, %v510
        %v515 = vadd.f32 %v486, %v511
        %v516 = vadd.f32 %v487, %v512
        %v517 = vadd.f32 %v488, %v513
        %v518 = vld [vmem:[%s326] sm:$0xff]
        %v519 = vld [vmem:[%s326 + $0x8] sm:$0xff]
        %v520 = vld [vmem:[%s326 + $0x10] sm:$0xff]
        %v521 = vld [vmem:[%s326 + $0x18] sm:$0xff]
        %v522 = vld [vmem:[%s2 + $0x6] sm:$0x1]
        %524 = vset.pattern.permute.xlu0 0
        %525 = vperm.xlu0 %524, %v518
        %v526 = vpop.permute.xlu0 %525
        %529 = vset.pattern.permute.xlu0 0
        %530 = vperm.xlu0 %529, %v519
        %v531 = vpop.permute.xlu0 %530
        %534 = vset.pattern.permute.xlu0 0
        %535 = vperm.xlu0 %534, %v520
        %v536 = vpop.permute.xlu0 %535
        %539 = vset.pattern.permute.xlu0 0
        %540 = vperm.xlu0 %539, %v521
        %v541 = vpop.permute.xlu0 %540
        %v543 = vlaneseq
        %v544 = vshrl.u32 %v543, 7
        %v545 = vsub.s32 0, %v544
        %v546 = vrot.slane %v522, %v545
        %v547 = vmul.f32 %v526, %v546
        %v548 = vmul.f32 %v531, %v546
        %v549 = vmul.f32 %v536, %v546
        %v550 = vmul.f32 %v541, %v546
        %v551 = vadd.f32 %v514, %v547
        %v552 = vadd.f32 %v515, %v548
        %v553 = vadd.f32 %v516, %v549
        %v554 = vadd.f32 %v517, %v550
        %v555 = vld [vmem:[%s2 + $0x7] sm:$0x1]
        %556 = vset.pattern.permute.xlu0 1
        %557 = vperm.xlu0 %556, %v518
        %v558 = vpop.permute.xlu0 %557
        %560 = vset.pattern.permute.xlu0 1
        %561 = vperm.xlu0 %560, %v519
        %v562 = vpop.permute.xlu0 %561
        %564 = vset.pattern.permute.xlu0 1
        %565 = vperm.xlu0 %564, %v520
        %v566 = vpop.permute.xlu0 %565
        %568 = vset.pattern.permute.xlu0 1
        %569 = vperm.xlu0 %568, %v521
        %v570 = vpop.permute.xlu0 %569
        %v572 = vlaneseq
        %v573 = vshrl.u32 %v572, 7
        %v574 = vsub.s32 0, %v573
        %v575 = vrot.slane %v555, %v574
        %v576 = vmul.f32 %v558, %v575
        %v577 = vmul.f32 %v562, %v575
        %v578 = vmul.f32 %v566, %v575
        %v579 = vmul.f32 %v570, %v575
        %v580 = vadd.f32 %v551, %v576
        %v581 = vadd.f32 %v552, %v577
        %v582 = vadd.f32 %v553, %v578
        %v583 = vadd.f32 %v554, %v579
        %v584 = vmax.f32 %v580, 0.0
        %v585 = vmax.f32 %v581, 0.0
        %v586 = vmax.f32 %v582, 0.0
        %v587 = vmax.f32 %v583, 0.0
        %vm588 = vcmask 261120
        %v589 = vsel %vm588, %v584, 0.0
        %590 = vadd.xlane.f32.xlu0 %v589
        %v591 = vpop.xlane.xlu0 %590
        %v592 = vsel %vm588, %v585, 0.0
        %593 = vadd.xlane.f32.xlu0 %v592
        %v594 = vpop.xlane.xlu0 %593
        %v595 = vsel %vm588, %v586, 0.0
        %596 = vadd.xlane.f32.xlu0 %v595
        %v597 = vpop.xlane.xlu0 %596
        %v598 = vsel %vm588, %v587, 0.0
        %599 = vadd.xlane.f32.xlu0 %v598
        %v600 = vpop.xlane.xlu0 %599
        %v601 = vrcp.pop 32.0
        %v602 = vmul.f32 %v591, %v601
        %v603 = vmul.f32 %v594, %v601
        %v604 = vmul.f32 %v597, %v601
        %v605 = vmul.f32 %v600, %v601
        %v606 = vsub.f32 %v584, %v602
        %v607 = vsub.f32 %v585, %v603
        %v608 = vsub.f32 %v586, %v604
        %v609 = vsub.f32 %v587, %v605
        %v610 = vmul.f32 %v606, %v606
        %v611 = vmul.f32 %v607, %v607
        %v612 = vmul.f32 %v608, %v608
        %v613 = vmul.f32 %v609, %v609
        %v614 = vsel %vm588, %v610, 0.0
        %615 = vadd.xlane.f32.xlu0 %v614
        %v616 = vpop.xlane.xlu0 %615
        %v617 = vsel %vm588, %v611, 0.0
        %618 = vadd.xlane.f32.xlu0 %v617
        %v619 = vpop.xlane.xlu0 %618
        %v620 = vsel %vm588, %v612, 0.0
        %621 = vadd.xlane.f32.xlu0 %v620
        %v622 = vpop.xlane.xlu0 %621
        %v623 = vsel %vm588, %v613, 0.0
        %624 = vadd.xlane.f32.xlu0 %v623
        %v625 = vpop.xlane.xlu0 %624
        %v626 = vmul.f32 %v616, %v601
        %v627 = vmul.f32 %v619, %v601
        %v628 = vmul.f32 %v622, %v601
        %v629 = vmul.f32 %v625, %v601
        %v630 = vadd.f32 %v626, 1e-05
        %v631 = vadd.f32 %v627, 1e-05
        %v632 = vadd.f32 %v628, 1e-05
        %v633 = vadd.f32 %v629, 1e-05
        %v634 = vrsqrt.pop %v630
        %v635 = vrsqrt.pop %v631
        %v636 = vrsqrt.pop %v632
        %v637 = vrsqrt.pop %v633
        %v638 = vld [vmem:[%s4] sm:$0x1]
        %v640 = vlaneseq
        %v641 = vshrl.u32 %v640, 7
        %v642 = vsub.s32 0, %v641
        %v643 = vrot.slane %v638, %v642
        %v645 = vmul.f32 %v634, %v643
        %v646 = vmul.f32 %v635, %v643
        %v647 = vmul.f32 %v636, %v643
        %v648 = vmul.f32 %v637, %v643
        %v649 = vmul.f32 %v606, %v645
        %v650 = vmul.f32 %v607, %v646
        %v651 = vmul.f32 %v608, %v647
        %v652 = vmul.f32 %v609, %v648
        %v653 = vld [vmem:[%s5] sm:$0x1]
        %v655 = vlaneseq
        %v656 = vshrl.u32 %v655, 7
        %v657 = vsub.s32 0, %v656
        %v658 = vrot.slane %v653, %v657
        %v660 = vadd.f32 %v649, %v658
        %v661 = vadd.f32 %v650, %v658
        %v662 = vadd.f32 %v651, %v658
        %v663 = vadd.f32 %v652, %v658
        %v664 = vld [vmem:[%s6] sm:$0xff]
        %v665 = vld [vmem:[%s6 + $0x8] sm:$0xff]
        %v666 = vld [vmem:[%s6 + $0x10] sm:$0xff]
        %v667 = vld [vmem:[%s6 + $0x18] sm:$0xff]
        %v668 = vld [vmem:[%s7] sm:$0x1]
        %v670 = vlaneseq
        %v671 = vshrl.u32 %v670, 7
        %v672 = vsub.s32 0, %v671
        %v673 = vrot.slane %v668, %v672
        %v676 = vsel %vm588, %v660, 0
        %v679 = vsel %vm588, %v661, 0
        %v682 = vsel %vm588, %v662, 0
        %v685 = vsel %vm588, %v663, 0
        %687 = vmatprep.subr.mxu0 0.0
        %688 = vmatpush1.msra.mxu0 %v664
        %689 = vmatprep.subr.mxu0 0.0
        %690 = vmatpush1.msra.mxu0 %v665
        %691 = vmatprep.subr.mxu0 0.0
        %692 = vmatpush1.msra.mxu0 %v666
        %693 = vmatprep.subr.mxu0 0.0
        %694 = vmatpush1.msra.mxu0 %v667
        %695 = vmatprep.subr.mxu0 0.0
        %696 = vmatpush1.msra.mxu0 0.0
        %697 = vmatprep.subr.mxu0 0.0
        %698 = vmatpush1.msra.mxu0 0.0
        %699 = vmatprep.subr.mxu0 0.0
        %700 = vmatpush1.msra.mxu0 0.0
        %701 = vmatprep.subr.mxu0 0.0
        %702 = vmatpush1.msra.mxu0 0.0
        %703 = vmatprep.subr.mxu0 0.0
        %704 = vmatpush1.msra.mxu0 0.0
        %705 = vmatprep.subr.mxu0 0.0
        %706 = vmatpush1.msra.mxu0 0.0
        %707 = vmatprep.subr.mxu0 0.0
        %708 = vmatpush1.msra.mxu0 0.0
        %709 = vmatprep.subr.mxu0 0.0
        %710 = vmatpush1.msra.mxu0 0.0
        %711 = vmatprep.subr.mxu0 0.0
        %712 = vmatpush1.msra.mxu0 0.0
        %713 = vmatprep.subr.mxu0 0.0
        %714 = vmatpush1.msra.mxu0 0.0
        %715 = vmatprep.subr.mxu0 0.0
        %716 = vmatpush1.msra.mxu0 0.0
        %717 = vmatprep.subr.mxu0 0.0
        %718 = vmatpush1.msra.mxu0 0.0
        %719 = vmatprep.subr.mxu0 0.0
        %720 = vmatpush1.msra.mxu0 0.0
        %721 = vmatprep.subr.mxu0 0.0
        %722 = vmatpush1.msra.mxu0 0.0
        %723 = vmatprep.subr.mxu0 0.0
        %724 = vmatpush1.msra.mxu0 0.0
        %725 = vmatprep.subr.mxu0 0.0
        %726 = vmatpush1.msra.mxu0 0.0
        %727 = vmatprep.subr.mxu0 0.0
        %728 = vmatpush1.msra.mxu0 0.0
        %729 = vmatprep.subr.mxu0 0.0
        %730 = vmatpush1.msra.mxu0 0.0
        %731 = vmatprep.subr.mxu0 0.0
        %732 = vmatpush1.msra.mxu0 0.0
        %733 = vmatprep.subr.mxu0 0.0
        %734 = vmatpush1.msra.mxu0 0.0
        %735 = vmatprep.subr.mxu0 0.0
        %736 = vmatpush1.msra.mxu0 0.0
        %737 = vmatprep.subr.mxu0 0.0
        %738 = vmatpush1.msra.mxu0 0.0
        %739 = vmatprep.subr.mxu0 0.0
        %740 = vmatpush1.msra.mxu0 0.0
        %741 = vmatprep.subr.mxu0 0.0
        %742 = vmatpush1.msra.mxu0 0.0
        %743 = vmatprep.subr.mxu0 0.0
        %744 = vmatpush1.msra.mxu0 0.0
        %745 = vmatprep.subr.mxu0 0.0
        %746 = vmatpush1.msra.mxu0 0.0
        %747 = vmatprep.subr.mxu0 0.0
        %748 = vmatpush1.msra.mxu0 0.0
        %749 = vmatprep.subr.mxu0 0.0
        %750 = vmatpush1.msra.mxu0 0.0
        %751 = vmatprep.mubr.f32.mxu0 0.0
        %752 = vmatmul.mubr.f32.gmra.mrb[0].mxu0 %v676
        %v753 = vpop.f32.mrb[0].mxu0
        %v754 = vadd.f32 %v673, %v753
        %v755 = vpop.f32.mrb[0].mxu0
        %756 = vmatprep.mubr.f32.mxu0 0.0
        %757 = vmatmul.mubr.f32.gmra.mrb[0].mxu0 %v679
        %v758 = vpop.f32.mrb[0].mxu0
        %v759 = vadd.f32 %v673, %v758
        %v760 = vpop.f32.mrb[0].mxu0
        %761 = vmatprep.mubr.f32.mxu0 0.0
        %762 = vmatmul.mubr.f32.gmra.mrb[0].mxu0 %v682
        %v763 = vpop.f32.mrb[0].mxu0
        %v764 = vadd.f32 %v673, %v763
        %v765 = vpop.f32.mrb[0].mxu0
        %766 = vmatprep.mubr.f32.mxu0 0.0
        %767 = vmatmul.mubr.f32.gmra.mrb[0].mxu0 %v685
        %v768 = vpop.f32.mrb[0].mxu0
        %v769 = vadd.f32 %v673, %v768
        %v770 = vpop.f32.mrb[0].mxu0
        %771 = vdwg.mxu0
        %v772 = vtanh.pop %v754
        %v773 = vtanh.pop %v759
        %v774 = vtanh.pop %v764
        %v775 = vtanh.pop %v769
        %776 = vst [vmem:[%s315] sm:$0xff] %v772
        %777 = vst [vmem:[%s315 + $0x8] sm:$0xff] %v773
        %778 = vst [vmem:[%s315 + $0x10] sm:$0xff] %v774
        %779 = vst [vmem:[%s315 + $0x18] sm:$0xff] %v775
        %s780 = sand.u32 %s208, 1
        %s781 = scalar_lea.sflag [#allocation3], %s780
        %s782 = sand.u32 %s208, 1
        %s783 = smul.addr %s782, 32
        %s784 = scalar_lea.vmem [#allocation2], %s783
        // Predicated region
        $region53: #{tpu_custom_call.1} parent=51 // pred_check
          %p785 = pneg %p218
        $region54: #{tpu_custom_call.1} parent=51 // pred_check_branch
          %787 = sbr.rel (%p785) target = $region56
        $region55: #{tpu_custom_call.1} parent=51 // pred_region
          %s788 = smul.u32 4, %s22
          %s790 = ssub.s32 512, 512
          %791 = vsyncadd %s781, %s790
          %s792 = smul.addr %s788, 128
          %s793 = scalar_lea.hbm %s8, %s792
          %s794 = sshll.u32 %s784, 4
          %s795 = int_to_ptr.vmem [resolvable:$true] %s794
          %800 = dma.vmem_to_hbm [thread:$0]  %s795, 512, %s793, %s781, 128, 128, 8
        $region56: #{tpu_custom_call.1} parent=51 // pred_fallthru
          _
      $region52: #{tpu_custom_call.1} parent=5 // pred_fallthru
        _
      %p801 = scmp.le.s32.totalorder 2, %s17
      // Predicated region
      $region57: #{tpu_custom_call.1} parent=5 // pred_check
        %p802 = pneg %p801
      $region58: #{tpu_custom_call.1} parent=5 // pred_check_branch
        %804 = sbr.rel (%p802) target = $region60
      $region59: #{tpu_custom_call.1} parent=5 // pred_region
        %s805 = ssub.s32 %s17, 2
        // Predicated region
        $region61: #{tpu_custom_call.1} parent=59 // pred_check
          %p806 = pneg %p224
        $region62: #{tpu_custom_call.1} parent=59 // pred_check_branch
          %808 = sbr.rel (%p806) target = $region64
        $region63: #{tpu_custom_call.1} parent=59 // pred_region
          %s809 = sand.u32 %s209, 1
          %s810 = scalar_lea.sflag [#allocation3], %s809
          %s811 = sand.u32 %s209, 1
          %s812 = smul.addr %s811, 32
          %s813 = scalar_lea.vmem [#allocation2], %s812
          %814 = dma.done %s810, 512
        $region64: #{tpu_custom_call.1} parent=59 // pred_fallthru
          _
      $region60: #{tpu_custom_call.1} parent=5 // pred_fallthru
        _
    $region6: #{tpu_custom_call.1} parent=1 // loop_footer
      %s21 = sadd.s32 1, %s17
    $region7: #{tpu_custom_call.1} parent=1 // loop_footer_branch
      %16 = sbr.rel target = $region3
    $region8: #{tpu_custom_call.1} parent=1 // loop_exit
      _
    %815 = vsyncpa [#allocation3], 1
    %s816 = scalar_lea.sflag [#allocation3], 1
    %817 = vsyncpa %s816, 1

// kernel: tpu_custom_call.1
$region0: #{tpu_custom_call.1}
  #allocation0 [shape = 'u32[]', space=smem, size = 0x4, offset = 0x4, fixed_abs, tag = 'smem constant byte address 0x4 - core index']
  #allocation1 [shape = 'u32[144,128]{1,0:T(1,128)}', space=vmem, size = 0x12000, scoped, tag = 'internal scratch']
  %s0 = inlined_call_operand.vmem [shape: f32[64,6], index: 0, kind: input, shape index: {}]
  %s1 = inlined_call_operand.vmem [shape: f32[64,2], index: 1, kind: input, shape index: {}]
  %s2 = inlined_call_operand.vmem [shape: f32[8,32], index: 2, kind: input, shape index: {}]
  %s3 = inlined_call_operand.vmem [shape: f32[1,32], index: 3, kind: input, shape index: {}]
  %s4 = inlined_call_operand.vmem [shape: f32[1,32], index: 4, kind: input, shape index: {}]
  %s5 = inlined_call_operand.vmem [shape: f32[1,32], index: 5, kind: input, shape index: {}]
  %s6 = inlined_call_operand.vmem [shape: f32[32,128], index: 6, kind: input, shape index: {}]
  %s7 = inlined_call_operand.vmem [shape: f32[1,128], index: 7, kind: input, shape index: {}]
  %s8 = inlined_call_operand.hbm [shape: f32[64,128], index: 8, kind: output, shape index: {}]
  %s9 = sld [smem:[#allocation0]]
  $region65: #{tpu_custom_call.1} parent=0
    _
  %s11 = ssub.s32 1, %s9
  %s12 = scalar_select 0, %s11, %s9
  $region1: #{tpu_custom_call.1} parent=0
    #allocation2 [shape = 'u8[32768]{0}', space=vmem, size = 0x8000, scoped, tag = 'output window, operand 0']
    #allocation3 [shape = 's32[2]{0}', space=sflag, size = 0x8, scoped, tag = 'scoped memory for tpu_custom_call.1']
    %13 = vsyncpa [#allocation3], 0
    %s14 = scalar_lea.sflag [#allocation3], 1
    %15 = vsyncpa %s14, 0
    loop: start=0, step=1, limit=4
    $region2: #{tpu_custom_call.1} parent=1 // loop_pre_header
      _
    $region3: #{tpu_custom_call.1} parent=1 // loop_header
      %s17 = sphi 0, %s21
      %p18 = scmp.ge.s32.totalorder %s17, 4
      %s27 = sphi 0, %s29
      %s30 = sphi 0, %s27
      %s31 = sphi 0, %s30
      %s47 = sphi 0, %s31
      %s53 = sphi 0, %s55
      %s56 = sphi 0, %s53
      %s57 = sphi 0, %s56
      %s73 = sphi 0, %s57
      %s77 = sphi 0, %s77
      %s79 = sphi 0, %s77
      %s80 = sphi 0, %s79
      %s94 = sphi 0, %s80
      %s98 = sphi 0, %s98
      %s100 = sphi 0, %s98
      %s101 = sphi 0, %s100
      %s115 = sphi 0, %s101
      %s119 = sphi 0, %s119
      %s121 = sphi 0, %s119
      %s122 = sphi 0, %s121
      %s136 = sphi 0, %s122
      %s140 = sphi 0, %s140
      %s142 = sphi 0, %s140
      %s143 = sphi 0, %s142
      %s157 = sphi 0, %s143
      %s161 = sphi 0, %s161
      %s163 = sphi 0, %s161
      %s164 = sphi 0, %s163
      %s178 = sphi 0, %s164
      %s182 = sphi 0, %s182
      %s184 = sphi 0, %s182
      %s185 = sphi 0, %s184
      %s199 = sphi 0, %s185
      %s205 = sphi 0, %s207
      %s208 = sphi 0, %s205
      %s209 = sphi 0, %s208
      %s225 = sphi 0, %s209
    $region4: #{tpu_custom_call.1} parent=1 // loop_header_branch
      %20 = sbr.rel (%p18) target = $region8
    $region5: #{tpu_custom_call.1} parent=1 // loop_body
      %s22 = ssub.s32 %s17, 1
      %s23 = ssub.s32 %s17, 2
      %s24 = sadd.s32 %s17, 1
      %s25 = ssub.s32 %s17, %s24
      %p26 = scmp.eq.s32.totalorder %s25, 0
      %s28 = sadd.s32 %s27, 1
      %s29 = scalar_select %p26, %s27, %s28
      %p32 = pneg %p26
      %p33 = scmp.eq.s32.totalorder %s17, 1
      %p34 = por %p32, %p33
      %p35 = scmp.ne.s32.totalorder %s27, %s30
      %p36 = scmp.eq.s32.totalorder %s17, 0
      %p37 = por %p35, %p36
      %p38 = scmp.ne.s32.totalorder %s27, %s30
      %p39 = scmp.eq.s32.totalorder %s22, 1
      %p40 = por %p38, %p39
      %p41 = scmp.ne.s32.totalorder %s30, %s31
      %p42 = scmp.eq.s32.totalorder %s22, 0
      %p43 = por %p41, %p42
      %p44 = scmp.ne.s32.totalorder %s30, %s31
      %p45 = scmp.eq.s32.totalorder %s23, 1
      %p46 = por %p44, %p45
      %p48 = scmp.ne.s32.totalorder %s31, %s47
      %p49 = scmp.eq.s32.totalorder %s23, 0
      %p50 = por %p48, %p49
      %s51 = ssub.s32 %s17, %s24
      %p52 = scmp.eq.s32.totalorder %s51, 0
      %s54 = sadd.s32 %s53, 1
      %s55 = scalar_select %p52, %s53, %s54
      %p58 = pneg %p52
      %p59 = scmp.eq.s32.totalorder %s17, 1
      %p60 = por %p58, %p59
      %p61 = scmp.ne.s32.totalorder %s53, %s56
      %p62 = scmp.eq.s32.totalorder %s17, 0
      %p63 = por %p61, %p62
      %p64 = scmp.ne.s32.totalorder %s53, %s56
      %p65 = scmp.eq.s32.totalorder %s22, 1
      %p66 = por %p64, %p65
      %p67 = scmp.ne.s32.totalorder %s56, %s57
      %p68 = scmp.eq.s32.totalorder %s22, 0
      %p69 = por %p67, %p68
      %p70 = scmp.ne.s32.totalorder %s56, %s57
      %p71 = scmp.eq.s32.totalorder %s23, 1
      %p72 = por %p70, %p71
      %p74 = scmp.ne.s32.totalorder %s57, %s73
      %p75 = scmp.eq.s32.totalorder %s23, 0
      %p76 = por %p74, %p75
      %s78 = sadd.s32 %s77, 1
      %p81 = scmp.eq.s32.totalorder %s17, 1
      %p82 = scmp.ne.s32.totalorder %s77, %s79
      %p83 = scmp.eq.s32.totalorder %s17, 0
      %p84 = por %p82, %p83
      %p85 = scmp.ne.s32.totalorder %s77, %s79
      %p86 = scmp.eq.s32.totalorder %s22, 1
      %p87 = por %p85, %p86
      %p88 = scmp.ne.s32.totalorder %s79, %s80
      %p89 = scmp.eq.s32.totalorder %s22, 0
      %p90 = por %p88, %p89
      %p91 = scmp.ne.s32.totalorder %s79, %s80
      %p92 = scmp.eq.s32.totalorder %s23, 1
      %p93 = por %p91, %p92
      %p95 = scmp.ne.s32.totalorder %s80, %s94
      %p96 = scmp.eq.s32.totalorder %s23, 0
      %p97 = por %p95, %p96
      %s99 = sadd.s32 %s98, 1
      %p102 = scmp.eq.s32.totalorder %s17, 1
      %p103 = scmp.ne.s32.totalorder %s98, %s100
      %p104 = scmp.eq.s32.totalorder %s17, 0
      %p105 = por %p103, %p104
      %p106 = scmp.ne.s32.totalorder %s98, %s100
      %p107 = scmp.eq.s32.totalorder %s22, 1
      %p108 = por %p106, %p107
      %p109 = scmp.ne.s32.totalorder %s100, %s101
      %p110 = scmp.eq.s32.totalorder %s22, 0
      %p111 = por %p109, %p110
      %p112 = scmp.ne.s32.totalorder %s100, %s101
      %p113 = scmp.eq.s32.totalorder %s23, 1
      %p114 = por %p112, %p113
      %p116 = scmp.ne.s32.totalorder %s101, %s115
      %p117 = scmp.eq.s32.totalorder %s23, 0
      %p118 = por %p116, %p117
      %s120 = sadd.s32 %s119, 1
      %p123 = scmp.eq.s32.totalorder %s17, 1
      %p124 = scmp.ne.s32.totalorder %s119, %s121
      %p125 = scmp.eq.s32.totalorder %s17, 0
      %p126 = por %p124, %p125
      %p127 = scmp.ne.s32.totalorder %s119, %s121
      %p128 = scmp.eq.s32.totalorder %s22, 1
      %p129 = por %p127, %p128
      %p130 = scmp.ne.s32.totalorder %s121, %s122
      %p131 = scmp.eq.s32.totalorder %s22, 0
      %p132 = por %p130, %p131
      %p133 = scmp.ne.s32.totalorder %s121, %s122
      %p134 = scmp.eq.s32.totalorder %s23, 1
      %p135 = por %p133, %p134
      %p137 = scmp.ne.s32.totalorder %s122, %s136
      %p138 = scmp.eq.s32.totalorder %s23, 0
      %p139 = por %p137, %p138
      %s141 = sadd.s32 %s140, 1
      %p144 = scmp.eq.s32.totalorder %s17, 1
      %p145 = scmp.ne.s32.totalorder %s140, %s142
      %p146 = scmp.eq.s32.totalorder %s17, 0
      %p147 = por %p145, %p146
      %p148 = scmp.ne.s32.totalorder %s140, %s142
      %p149 = scmp.eq.s32.totalorder %s22, 1
      %p150 = por %p148, %p149
      %p151 = scmp.ne.s32.totalorder %s142, %s143
      %p152 = scmp.eq.s32.totalorder %s22, 0
      %p153 = por %p151, %p152
      %p154 = scmp.ne.s32.totalorder %s142, %s143
      %p155 = scmp.eq.s32.totalorder %s23, 1
      %p156 = por %p154, %p155
      %p158 = scmp.ne.s32.totalorder %s143, %s157
      %p159 = scmp.eq.s32.totalorder %s23, 0
      %p160 = por %p158, %p159
      %s162 = sadd.s32 %s161, 1
      %p165 = scmp.eq.s32.totalorder %s17, 1
      %p166 = scmp.ne.s32.totalorder %s161, %s163
      %p167 = scmp.eq.s32.totalorder %s17, 0
      %p168 = por %p166, %p167
      %p169 = scmp.ne.s32.totalorder %s161, %s163
      %p170 = scmp.eq.s32.totalorder %s22, 1
      %p171 = por %p169, %p170
      %p172 = scmp.ne.s32.totalorder %s163, %s164
      %p173 = scmp.eq.s32.totalorder %s22, 0
      %p174 = por %p172, %p173
      %p175 = scmp.ne.s32.totalorder %s163, %s164
      %p176 = scmp.eq.s32.totalorder %s23, 1
      %p177 = por %p175, %p176
      %p179 = scmp.ne.s32.totalorder %s164, %s178
      %p180 = scmp.eq.s32.totalorder %s23, 0
      %p181 = por %p179, %p180
      %s183 = sadd.s32 %s182, 1
      %p186 = scmp.eq.s32.totalorder %s17, 1
      %p187 = scmp.ne.s32.totalorder %s182, %s184
      %p188 = scmp.eq.s32.totalorder %s17, 0
      %p189 = por %p187, %p188
      %p190 = scmp.ne.s32.totalorder %s182, %s184
      %p191 = scmp.eq.s32.totalorder %s22, 1
      %p192 = por %p190, %p191
      %p193 = scmp.ne.s32.totalorder %s184, %s185
      %p194 = scmp.eq.s32.totalorder %s22, 0
      %p195 = por %p193, %p194
      %p196 = scmp.ne.s32.totalorder %s184, %s185
      %p197 = scmp.eq.s32.totalorder %s23, 1
      %p198 = por %p196, %p197
      %p200 = scmp.ne.s32.totalorder %s185, %s199
      %p201 = scmp.eq.s32.totalorder %s23, 0
      %p202 = por %p200, %p201
      %s203 = ssub.s32 %s17, %s24
      %p204 = scmp.eq.s32.totalorder %s203, 0
      %s206 = sadd.s32 %s205, 1
      %s207 = scalar_select %p204, %s205, %s206
      %p210 = pneg %p204
      %p211 = scmp.eq.s32.totalorder %s17, 1
      %p212 = por %p210, %p211
      %p213 = scmp.ne.s32.totalorder %s205, %s208
      %p214 = scmp.eq.s32.totalorder %s17, 0
      %p215 = por %p213, %p214
      %p216 = scmp.ne.s32.totalorder %s205, %s208
      %p217 = scmp.eq.s32.totalorder %s22, 1
      %p218 = por %p216, %p217
      %p219 = scmp.ne.s32.totalorder %s208, %s209
      %p220 = scmp.eq.s32.totalorder %s22, 0
      %p221 = por %p219, %p220
      %p222 = scmp.ne.s32.totalorder %s208, %s209
      %p223 = scmp.eq.s32.totalorder %s23, 1
      %p224 = por %p222, %p223
      %p226 = scmp.ne.s32.totalorder %s209, %s225
      %p227 = scmp.eq.s32.totalorder %s23, 0
      %p228 = por %p226, %p227
      %p229 = scmp.le.s32.totalorder 1, %s17
      %p230 = scmp.lt.s32.totalorder %s17, 3
      %p231 = pnand %p229, %p230
      %p232 = pneg %p231
      // Predicated region
      $region9: #{tpu_custom_call.1} parent=5 // pred_check
        _
      $region10: #{tpu_custom_call.1} parent=5 // pred_check_branch
        %234 = sbr.rel (%p231) target = $region12
      $region11: #{tpu_custom_call.1} parent=5 // pred_region
        %s235 = ssub.s32 %s17, 1
        // Predicated region
        $region13: #{tpu_custom_call.1} parent=11 // pred_check
          %p236 = pneg %p90
        $region14: #{tpu_custom_call.1} parent=11 // pred_check_branch
          %238 = sbr.rel (%p236) target = $region16
        $region15: #{tpu_custom_call.1} parent=11 // pred_region
          _
        $region16: #{tpu_custom_call.1} parent=11 // pred_fallthru
          _
        // Predicated region
        $region17: #{tpu_custom_call.1} parent=11 // pred_check
          %p239 = pneg %p111
        $region18: #{tpu_custom_call.1} parent=11 // pred_check_branch
          %241 = sbr.rel (%p239) target = $region20
        $region19: #{tpu_custom_call.1} parent=11 // pred_region
          _
        $region20: #{tpu_custom_call.1} parent=11 // pred_fallthru
          _
        // Predicated region
        $region21: #{tpu_custom_call.1} parent=11 // pred_check
          %p242 = pneg %p132
        $region22: #{tpu_custom_call.1} parent=11 // pred_check_branch
          %244 = sbr.rel (%p242) target = $region24
        $region23: #{tpu_custom_call.1} parent=11 // pred_region
          _
        $region24: #{tpu_custom_call.1} parent=11 // pred_fallthru
          _
        // Predicated region
        $region25: #{tpu_custom_call.1} parent=11 // pred_check
          %p245 = pneg %p153
        $region26: #{tpu_custom_call.1} parent=11 // pred_check_branch
          %247 = sbr.rel (%p245) target = $region28
        $region27: #{tpu_custom_call.1} parent=11 // pred_region
          _
        $region28: #{tpu_custom_call.1} parent=11 // pred_fallthru
          _
        // Predicated region
        $region29: #{tpu_custom_call.1} parent=11 // pred_check
          %p248 = pneg %p174
        $region30: #{tpu_custom_call.1} parent=11 // pred_check_branch
          %250 = sbr.rel (%p248) target = $region32
        $region31: #{tpu_custom_call.1} parent=11 // pred_region
          _
        $region32: #{tpu_custom_call.1} parent=11 // pred_fallthru
          _
        // Predicated region
        $region33: #{tpu_custom_call.1} parent=11 // pred_check
          %p251 = pneg %p195
        $region34: #{tpu_custom_call.1} parent=11 // pred_check_branch
          %253 = sbr.rel (%p251) target = $region36
        $region35: #{tpu_custom_call.1} parent=11 // pred_region
          _
        $region36: #{tpu_custom_call.1} parent=11 // pred_fallthru
          _
      $region12: #{tpu_custom_call.1} parent=5 // pred_fallthru
        _
      %p254 = scmp.lt.s32.totalorder %s17, 2
      // Predicated region
      $region37: #{tpu_custom_call.1} parent=5 // pred_check
        %p255 = pneg %p254
      $region38: #{tpu_custom_call.1} parent=5 // pred_check_branch
        %257 = sbr.rel (%p255) target = $region40
      $region39: #{tpu_custom_call.1} parent=5 // pred_region
        // Predicated region
        $region41: #{tpu_custom_call.1} parent=39 // pred_check
          %p258 = pneg %p37
        $region42: #{tpu_custom_call.1} parent=39 // pred_check_branch
          %260 = sbr.rel (%p258) target = $region44
        $region43: #{tpu_custom_call.1} parent=39 // pred_region
          %s261 = smul.u32 4, %s17
          %p262 = scmp.lt.s32.totalorder %s261, 7
          %s263 = scalar_select %p262, %s261, 7
          %s264 = smul.addr %s263, 8
          %s265 = scalar_lea.vmem %s0, %s264
          %s266 = smul.u32 4, %s17
        $region44: #{tpu_custom_call.1} parent=39 // pred_fallthru
          _
        // Predicated region
        $region45: #{tpu_custom_call.1} parent=39 // pred_check
          %p267 = pneg %p63
        $region46: #{tpu_custom_call.1} parent=39 // pred_check_branch
          %269 = sbr.rel (%p267) target = $region48
        $region47: #{tpu_custom_call.1} parent=39 // pred_region
          %s270 = smul.u32 4, %s17
          %p271 = scmp.lt.s32.totalorder %s270, 7
          %s272 = scalar_select %p271, %s270, 7
          %s273 = smul.addr %s272, 8
          %s274 = scalar_lea.vmem %s1, %s273
          %s275 = smul.u32 4, %s17
        $region48: #{tpu_custom_call.1} parent=39 // pred_fallthru
          _
      $region40: #{tpu_custom_call.1} parent=5 // pred_fallthru
        _
      %p276 = scmp.le.s32.totalorder 1, %s17
      %p277 = scmp.lt.s32.totalorder %s17, 3
      %p278 = pnand %p276, %p277
      %p279 = pneg %p278
      // Predicated region
      $region49: #{tpu_custom_call.1} parent=5 // pred_check
        _
      $region50: #{tpu_custom_call.1} parent=5 // pred_check_branch
        %281 = sbr.rel (%p278) target = $region52
      $region51: #{tpu_custom_call.1} parent=5 // pred_region
        %s282 = ssub.s32 %s17, 1
        %s283 = smul.u32 4, %s22
        %p284 = scmp.lt.s32.totalorder %s283, 7
        %s285 = scalar_select %p284, %s283, 7
        %s286 = smul.addr %s285, 8
        %s287 = scalar_lea.vmem %s0, %s286
        %p288 = pneg %p43
        %p289 = pneg %p40
        %s290 = smul.u32 4, %s22
        %p291 = scmp.lt.s32.totalorder %s290, 7
        %s292 = scalar_select %p291, %s290, 7
        %s293 = smul.addr %s292, 8
        %s294 = scalar_lea.vmem %s1, %s293
        %p295 = pneg %p69
        %p296 = pneg %p66
        %p297 = pneg %p90
        %p298 = pneg %p87
        %p299 = pneg %p111
        %p300 = pneg %p108
        %p301 = pneg %p132
        %p302 = pneg %p129
        %p303 = pneg %p153
        %p304 = pneg %p150
        %p305 = pneg %p174
        %p306 = pneg %p171
        %p307 = pneg %p195
        %p308 = pneg %p192
        %p309 = pneg %p221
        %p310 = pneg %p218
        %s311 = sand.u32 %s208, 1
        %s312 = scalar_lea.sflag [#allocation3], %s311
        %s313 = sand.u32 %s208, 1
        %s314 = smul.addr %s313, 32
        %s315 = scalar_lea.vmem [#allocation2], %s314
        %s316 = smul.u32 4, %s22
        %p317 = scmp.lt.s32.totalorder %s316, 7
        %s318 = scalar_select %p317, %s316, 7
        %s319 = smul.addr %s318, 8
        %s320 = scalar_lea.vmem %s0, %s319
        %s321 = smul.u32 4, %s22
        %s322 = smul.u32 4, %s22
        %p323 = scmp.lt.s32.totalorder %s322, 7
        %s324 = scalar_select %p323, %s322, 7
        %s325 = smul.addr %s324, 8
        %s326 = scalar_lea.vmem %s1, %s325
        %s327 = smul.u32 4, %s22
        %s328 = smul.u32 4, %s22
        %v329 = vld [vmem:[%s3] sm:$0x1]
        %v330 = vld [vmem:[%s320] sm:$0xff]
        %v331 = vld [vmem:[%s320 + $0x8] sm:$0xff]
        %v332 = vld [vmem:[%s320 + $0x10] sm:$0xff]
        %v333 = vld [vmem:[%s320 + $0x18] sm:$0xff]
        %v334 = vld [vmem:[%s2] sm:$0x1]
        %336 = vset.pattern.permute.xlu0 0
        %337 = vperm.xlu0 %336, %v330
        %v338 = vpop.permute.xlu0 %337
        %341 = vset.pattern.permute.xlu0 0
        %342 = vperm.xlu0 %341, %v331
        %v343 = vpop.permute.xlu0 %342
        %346 = vset.pattern.permute.xlu0 0
        %347 = vperm.xlu0 %346, %v332
        %v348 = vpop.permute.xlu0 %347
        %351 = vset.pattern.permute.xlu0 0
        %352 = vperm.xlu0 %351, %v333
        %v353 = vpop.permute.xlu0 %352
        %v355 = vlaneseq
        %v356 = vshrl.u32 %v355, 7
        %v357 = vsub.s32 0, %v356
        %v358 = vrot.slane %v334, %v357
        %v359 = vmul.f32 %v338, %v358
        %v360 = vmul.f32 %v343, %v358
        %v361 = vmul.f32 %v348, %v358
        %v362 = vmul.f32 %v353, %v358
        %v364 = vlaneseq
        %v365 = vshrl.u32 %v364, 7
        %v366 = vsub.s32 0, %v365
        %v367 = vrot.slane %v329, %v366
        %v369 = vadd.f32 %v367, %v359
        %v370 = vadd.f32 %v367, %v360
        %v371 = vadd.f32 %v367, %v361
        %v372 = vadd.f32 %v367, %v362
        %v373 = vld [vmem:[%s2 + $0x1] sm:$0x1]
        %374 = vset.pattern.permute.xlu0 1
        %375 = vperm.xlu0 %374, %v330
        %v376 = vpop.permute.xlu0 %375
        %378 = vset.pattern.permute.xlu0 1
        %379 = vperm.xlu0 %378, %v331
        %v380 = vpop.permute.xlu0 %379
        %382 = vset.pattern.permute.xlu0 1
        %383 = vperm.xlu0 %382, %v332
        %v384 = vpop.permute.xlu0 %383
        %386 = vset.pattern.permute.xlu0 1
        %387 = vperm.xlu0 %386, %v333
        %v388 = vpop.permute.xlu0 %387
        %v390 = vlaneseq
        %v391 = vshrl.u32 %v390, 7
        %v392 = vsub.s32 0, %v391
        %v393 = vrot.slane %v373, %v392
        %v394 = vmul.f32 %v376, %v393
        %v395 = vmul.f32 %v380, %v393
        %v396 = vmul.f32 %v384, %v393
        %v397 = vmul.f32 %v388, %v393
        %v398 = vadd.f32 %v369, %v394
        %v399 = vadd.f32 %v370, %v395
        %v400 = vadd.f32 %v371, %v396
        %v401 = vadd.f32 %v372, %v397
        %v402 = vld [vmem:[%s2 + $0x2] sm:$0x1]
        %403 = vset.pattern.permute.xlu0 2
        %404 = vperm.xlu0 %403, %v330
        %v405 = vpop.permute.xlu0 %404
        %407 = vset.pattern.permute.xlu0 2
        %408 = vperm.xlu0 %407, %v331
        %v409 = vpop.permute.xlu0 %408
        %411 = vset.pattern.permute.xlu0 2
        %412 = vperm.xlu0 %411, %v332
        %v413 = vpop.permute.xlu0 %412
        %415 = vset.pattern.permute.xlu0 2
        %416 = vperm.xlu0 %415, %v333
        %v417 = vpop.permute.xlu0 %416
        %v419 = vlaneseq
        %v420 = vshrl.u32 %v419, 7
        %v421 = vsub.s32 0, %v420
        %v422 = vrot.slane %v402, %v421
        %v423 = vmul.f32 %v405, %v422
        %v424 = vmul.f32 %v409, %v422
        %v425 = vmul.f32 %v413, %v422
        %v426 = vmul.f32 %v417, %v422
        %v427 = vadd.f32 %v398, %v423
        %v428 = vadd.f32 %v399, %v424
        %v429 = vadd.f32 %v400, %v425
        %v430 = vadd.f32 %v401, %v426
        %v431 = vld [vmem:[%s2 + $0x3] sm:$0x1]
        %432 = vset.pattern.permute.xlu0 3
        %433 = vperm.xlu0 %432, %v330
        %v434 = vpop.permute.xlu0 %433
        %436 = vset.pattern.permute.xlu0 3
        %437 = vperm.xlu0 %436, %v331
        %v438 = vpop.permute.xlu0 %437
        %440 = vset.pattern.permute.xlu0 3
        %441 = vperm.xlu0 %440, %v332
        %v442 = vpop.permute.xlu0 %441
        %444 = vset.pattern.permute.xlu0 3
        %445 = vperm.xlu0 %444, %v333
        %v446 = vpop.permute.xlu0 %445
        %v448 = vlaneseq
        %v449 = vshrl.u32 %v448, 7
        %v450 = vsub.s32 0, %v449
        %v451 = vrot.slane %v431, %v450
        %v452 = vmul.f32 %v434, %v451
        %v453 = vmul.f32 %v438, %v451
        %v454 = vmul.f32 %v442, %v451
        %v455 = vmul.f32 %v446, %v451
        %v456 = vadd.f32 %v427, %v452
        %v457 = vadd.f32 %v428, %v453
        %v458 = vadd.f32 %v429, %v454
        %v459 = vadd.f32 %v430, %v455
        %v460 = vld [vmem:[%s2 + $0x4] sm:$0x1]
        %461 = vset.pattern.permute.xlu0 4
        %462 = vperm.xlu0 %461, %v330
        %v463 = vpop.permute.xlu0 %462
        %465 = vset.pattern.permute.xlu0 4
        %466 = vperm.xlu0 %465, %v331
        %v467 = vpop.permute.xlu0 %466
        %469 = vset.pattern.permute.xlu0 4
        %470 = vperm.xlu0 %469, %v332
        %v471 = vpop.permute.xlu0 %470
        %473 = vset.pattern.permute.xlu0 4
        %474 = vperm.xlu0 %473, %v333
        %v475 = vpop.permute.xlu0 %474
        %v477 = vlaneseq
        %v478 = vshrl.u32 %v477, 7
        %v479 = vsub.s32 0, %v478
        %v480 = vrot.slane %v460, %v479
        %v481 = vmul.f32 %v463, %v480
        %v482 = vmul.f32 %v467, %v480
        %v483 = vmul.f32 %v471, %v480
        %v484 = vmul.f32 %v475, %v480
        %v485 = vadd.f32 %v456, %v481
        %v486 = vadd.f32 %v457, %v482
        %v487 = vadd.f32 %v458, %v483
        %v488 = vadd.f32 %v459, %v484
        %v489 = vld [vmem:[%s2 + $0x5] sm:$0x1]
        %490 = vset.pattern.permute.xlu0 5
        %491 = vperm.xlu0 %490, %v330
        %v492 = vpop.permute.xlu0 %491
        %494 = vset.pattern.permute.xlu0 5
        %495 = vperm.xlu0 %494, %v331
        %v496 = vpop.permute.xlu0 %495
        %498 = vset.pattern.permute.xlu0 5
        %499 = vperm.xlu0 %498, %v332
        %v500 = vpop.permute.xlu0 %499
        %502 = vset.pattern.permute.xlu0 5
        %503 = vperm.xlu0 %502, %v333
        %v504 = vpop.permute.xlu0 %503
        %v506 = vlaneseq
        %v507 = vshrl.u32 %v506, 7
        %v508 = vsub.s32 0, %v507
        %v509 = vrot.slane %v489, %v508
        %v510 = vmul.f32 %v492, %v509
        %v511 = vmul.f32 %v496, %v509
        %v512 = vmul.f32 %v500, %v509
        %v513 = vmul.f32 %v504, %v509
        %v514 = vadd.f32 %v485, %v510
        %v515 = vadd.f32 %v486, %v511
        %v516 = vadd.f32 %v487, %v512
        %v517 = vadd.f32 %v488, %v513
        %v518 = vld [vmem:[%s326] sm:$0xff]
        %v519 = vld [vmem:[%s326 + $0x8] sm:$0xff]
        %v520 = vld [vmem:[%s326 + $0x10] sm:$0xff]
        %v521 = vld [vmem:[%s326 + $0x18] sm:$0xff]
        %v522 = vld [vmem:[%s2 + $0x6] sm:$0x1]
        %524 = vset.pattern.permute.xlu0 0
        %525 = vperm.xlu0 %524, %v518
        %v526 = vpop.permute.xlu0 %525
        %529 = vset.pattern.permute.xlu0 0
        %530 = vperm.xlu0 %529, %v519
        %v531 = vpop.permute.xlu0 %530
        %534 = vset.pattern.permute.xlu0 0
        %535 = vperm.xlu0 %534, %v520
        %v536 = vpop.permute.xlu0 %535
        %539 = vset.pattern.permute.xlu0 0
        %540 = vperm.xlu0 %539, %v521
        %v541 = vpop.permute.xlu0 %540
        %v543 = vlaneseq
        %v544 = vshrl.u32 %v543, 7
        %v545 = vsub.s32 0, %v544
        %v546 = vrot.slane %v522, %v545
        %v547 = vmul.f32 %v526, %v546
        %v548 = vmul.f32 %v531, %v546
        %v549 = vmul.f32 %v536, %v546
        %v550 = vmul.f32 %v541, %v546
        %v551 = vadd.f32 %v514, %v547
        %v552 = vadd.f32 %v515, %v548
        %v553 = vadd.f32 %v516, %v549
        %v554 = vadd.f32 %v517, %v550
        %v555 = vld [vmem:[%s2 + $0x7] sm:$0x1]
        %556 = vset.pattern.permute.xlu0 1
        %557 = vperm.xlu0 %556, %v518
        %v558 = vpop.permute.xlu0 %557
        %560 = vset.pattern.permute.xlu0 1
        %561 = vperm.xlu0 %560, %v519
        %v562 = vpop.permute.xlu0 %561
        %564 = vset.pattern.permute.xlu0 1
        %565 = vperm.xlu0 %564, %v520
        %v566 = vpop.permute.xlu0 %565
        %568 = vset.pattern.permute.xlu0 1
        %569 = vperm.xlu0 %568, %v521
        %v570 = vpop.permute.xlu0 %569
        %v572 = vlaneseq
        %v573 = vshrl.u32 %v572, 7
        %v574 = vsub.s32 0, %v573
        %v575 = vrot.slane %v555, %v574
        %v576 = vmul.f32 %v558, %v575
        %v577 = vmul.f32 %v562, %v575
        %v578 = vmul.f32 %v566, %v575
        %v579 = vmul.f32 %v570, %v575
        %v580 = vadd.f32 %v551, %v576
        %v581 = vadd.f32 %v552, %v577
        %v582 = vadd.f32 %v553, %v578
        %v583 = vadd.f32 %v554, %v579
        %v584 = vmax.f32 %v580, 0.0
        %v585 = vmax.f32 %v581, 0.0
        %v586 = vmax.f32 %v582, 0.0
        %v587 = vmax.f32 %v583, 0.0
        %vm588 = vcmask 261120
        %v589 = vsel %vm588, %v584, 0.0
        %590 = vadd.xlane.f32.xlu0 %v589
        %v591 = vpop.xlane.xlu0 %590
        %v592 = vsel %vm588, %v585, 0.0
        %593 = vadd.xlane.f32.xlu0 %v592
        %v594 = vpop.xlane.xlu0 %593
        %v595 = vsel %vm588, %v586, 0.0
        %596 = vadd.xlane.f32.xlu0 %v595
        %v597 = vpop.xlane.xlu0 %596
        %v598 = vsel %vm588, %v587, 0.0
        %599 = vadd.xlane.f32.xlu0 %v598
        %v600 = vpop.xlane.xlu0 %599
        %v601 = vrcp.pop 32.0
        %v602 = vmul.f32 %v591, %v601
        %v603 = vmul.f32 %v594, %v601
        %v604 = vmul.f32 %v597, %v601
        %v605 = vmul.f32 %v600, %v601
        %v606 = vsub.f32 %v584, %v602
        %v607 = vsub.f32 %v585, %v603
        %v608 = vsub.f32 %v586, %v604
        %v609 = vsub.f32 %v587, %v605
        %v610 = vmul.f32 %v606, %v606
        %v611 = vmul.f32 %v607, %v607
        %v612 = vmul.f32 %v608, %v608
        %v613 = vmul.f32 %v609, %v609
        %v614 = vsel %vm588, %v610, 0.0
        %615 = vadd.xlane.f32.xlu0 %v614
        %v616 = vpop.xlane.xlu0 %615
        %v617 = vsel %vm588, %v611, 0.0
        %618 = vadd.xlane.f32.xlu0 %v617
        %v619 = vpop.xlane.xlu0 %618
        %v620 = vsel %vm588, %v612, 0.0
        %621 = vadd.xlane.f32.xlu0 %v620
        %v622 = vpop.xlane.xlu0 %621
        %v623 = vsel %vm588, %v613, 0.0
        %624 = vadd.xlane.f32.xlu0 %v623
        %v625 = vpop.xlane.xlu0 %624
        %v626 = vmul.f32 %v616, %v601
        %v627 = vmul.f32 %v619, %v601
        %v628 = vmul.f32 %v622, %v601
        %v629 = vmul.f32 %v625, %v601
        %v630 = vadd.f32 %v626, 1e-05
        %v631 = vadd.f32 %v627, 1e-05
        %v632 = vadd.f32 %v628, 1e-05
        %v633 = vadd.f32 %v629, 1e-05
        %v634 = vrsqrt.pop %v630
        %v635 = vrsqrt.pop %v631
        %v636 = vrsqrt.pop %v632
        %v637 = vrsqrt.pop %v633
        %v638 = vld [vmem:[%s4] sm:$0x1]
        %v640 = vlaneseq
        %v641 = vshrl.u32 %v640, 7
        %v642 = vsub.s32 0, %v641
        %v643 = vrot.slane %v638, %v642
        %v645 = vmul.f32 %v634, %v643
        %v646 = vmul.f32 %v635, %v643
        %v647 = vmul.f32 %v636, %v643
        %v648 = vmul.f32 %v637, %v643
        %v649 = vmul.f32 %v606, %v645
        %v650 = vmul.f32 %v607, %v646
        %v651 = vmul.f32 %v608, %v647
        %v652 = vmul.f32 %v609, %v648
        %v653 = vld [vmem:[%s5] sm:$0x1]
        %v655 = vlaneseq
        %v656 = vshrl.u32 %v655, 7
        %v657 = vsub.s32 0, %v656
        %v658 = vrot.slane %v653, %v657
        %v660 = vadd.f32 %v649, %v658
        %v661 = vadd.f32 %v650, %v658
        %v662 = vadd.f32 %v651, %v658
        %v663 = vadd.f32 %v652, %v658
        %v664 = vld [vmem:[%s6] sm:$0xff]
        %v665 = vld [vmem:[%s6 + $0x8] sm:$0xff]
        %v666 = vld [vmem:[%s6 + $0x10] sm:$0xff]
        %v667 = vld [vmem:[%s6 + $0x18] sm:$0xff]
        %v668 = vld [vmem:[%s7] sm:$0x1]
        %v670 = vlaneseq
        %v671 = vshrl.u32 %v670, 7
        %v672 = vsub.s32 0, %v671
        %v673 = vrot.slane %v668, %v672
        %v676 = vsel %vm588, %v660, 0
        %v679 = vsel %vm588, %v661, 0
        %v682 = vsel %vm588, %v662, 0
        %v685 = vsel %vm588, %v663, 0
        %687 = vmatprep.subr.mxu0 0.0
        %688 = vmatpush1.msra.mxu0 %v664
        %689 = vmatprep.subr.mxu0 0.0
        %690 = vmatpush1.msra.mxu0 %v665
        %691 = vmatprep.subr.mxu0 0.0
        %692 = vmatpush1.msra.mxu0 %v666
        %693 = vmatprep.subr.mxu0 0.0
        %694 = vmatpush1.msra.mxu0 %v667
        %695 = vmatprep.subr.mxu0 0.0
        %696 = vmatpush1.msra.mxu0 0.0
        %697 = vmatprep.subr.mxu0 0.0
        %698 = vmatpush1.msra.mxu0 0.0
        %699 = vmatprep.subr.mxu0 0.0
        %700 = vmatpush1.msra.mxu0 0.0
        %701 = vmatprep.subr.mxu0 0.0
        %702 = vmatpush1.msra.mxu0 0.0
        %703 = vmatprep.subr.mxu0 0.0
        %704 = vmatpush1.msra.mxu0 0.0
        %705 = vmatprep.subr.mxu0 0.0
        %706 = vmatpush1.msra.mxu0 0.0
        %707 = vmatprep.subr.mxu0 0.0
        %708 = vmatpush1.msra.mxu0 0.0
        %709 = vmatprep.subr.mxu0 0.0
        %710 = vmatpush1.msra.mxu0 0.0
        %711 = vmatprep.subr.mxu0 0.0
        %712 = vmatpush1.msra.mxu0 0.0
        %713 = vmatprep.subr.mxu0 0.0
        %714 = vmatpush1.msra.mxu0 0.0
        %715 = vmatprep.subr.mxu0 0.0
        %716 = vmatpush1.msra.mxu0 0.0
        %717 = vmatprep.subr.mxu0 0.0
        %718 = vmatpush1.msra.mxu0 0.0
        %719 = vmatprep.subr.mxu0 0.0
        %720 = vmatpush1.msra.mxu0 0.0
        %721 = vmatprep.subr.mxu0 0.0
        %722 = vmatpush1.msra.mxu0 0.0
        %723 = vmatprep.subr.mxu0 0.0
        %724 = vmatpush1.msra.mxu0 0.0
        %725 = vmatprep.subr.mxu0 0.0
        %726 = vmatpush1.msra.mxu0 0.0
        %727 = vmatprep.subr.mxu0 0.0
        %728 = vmatpush1.msra.mxu0 0.0
        %729 = vmatprep.subr.mxu0 0.0
        %730 = vmatpush1.msra.mxu0 0.0
        %731 = vmatprep.subr.mxu0 0.0
        %732 = vmatpush1.msra.mxu0 0.0
        %733 = vmatprep.subr.mxu0 0.0
        %734 = vmatpush1.msra.mxu0 0.0
        %735 = vmatprep.subr.mxu0 0.0
        %736 = vmatpush1.msra.mxu0 0.0
        %737 = vmatprep.subr.mxu0 0.0
        %738 = vmatpush1.msra.mxu0 0.0
        %739 = vmatprep.subr.mxu0 0.0
        %740 = vmatpush1.msra.mxu0 0.0
        %741 = vmatprep.subr.mxu0 0.0
        %742 = vmatpush1.msra.mxu0 0.0
        %743 = vmatprep.subr.mxu0 0.0
        %744 = vmatpush1.msra.mxu0 0.0
        %745 = vmatprep.subr.mxu0 0.0
        %746 = vmatpush1.msra.mxu0 0.0
        %747 = vmatprep.subr.mxu0 0.0
        %748 = vmatpush1.msra.mxu0 0.0
        %749 = vmatprep.subr.mxu0 0.0
        %750 = vmatpush1.msra.mxu0 0.0
        %751 = vmatprep.mubr.f32.mxu0 0.0
        %752 = vmatmul.mubr.f32.gmra.mrb[0].mxu0 %v676
        %v753 = vpop.f32.mrb[0].mxu0
        %v754 = vadd.f32 %v673, %v753
        %v755 = vpop.f32.mrb[0].mxu0
        %756 = vmatprep.mubr.f32.mxu0 0.0
        %757 = vmatmul.mubr.f32.gmra.mrb[0].mxu0 %v679
        %v758 = vpop.f32.mrb[0].mxu0
        %v759 = vadd.f32 %v673, %v758
        %v760 = vpop.f32.mrb[0].mxu0
        %761 = vmatprep.mubr.f32.mxu0 0.0
        %762 = vmatmul.mubr.f32.gmra.mrb[0].mxu0 %v682
        %v763 = vpop.f32.mrb[0].mxu0
        %v764 = vadd.f32 %v673, %v763
        %v765 = vpop.f32.mrb[0].mxu0
        %766 = vmatprep.mubr.f32.mxu0 0.0
        %767 = vmatmul.mubr.f32.gmra.mrb[0].mxu0 %v685
        %v768 = vpop.f32.mrb[0].mxu0
        %v769 = vadd.f32 %v673, %v768
        %v770 = vpop.f32.mrb[0].mxu0
        %771 = vdwg.mxu0
        %v772 = vtanh.pop %v754
        %v773 = vtanh.pop %v759
        %v774 = vtanh.pop %v764
        %v775 = vtanh.pop %v769
        %776 = vst [vmem:[%s315] sm:$0xff] %v772
        %777 = vst [vmem:[%s315 + $0x8] sm:$0xff] %v773
        %778 = vst [vmem:[%s315 + $0x10] sm:$0xff] %v774
        %779 = vst [vmem:[%s315 + $0x18] sm:$0xff] %v775
        %s780 = sand.u32 %s208, 1
        %s781 = scalar_lea.sflag [#allocation3], %s780
        %s782 = sand.u32 %s208, 1
        %s783 = smul.addr %s782, 32
        %s784 = scalar_lea.vmem [#allocation2], %s783
        // Predicated region
        $region53: #{tpu_custom_call.1} parent=51 // pred_check
          %p785 = pneg %p218
        $region54: #{tpu_custom_call.1} parent=51 // pred_check_branch
          %787 = sbr.rel (%p785) target = $region56
        $region55: #{tpu_custom_call.1} parent=51 // pred_region
          %s788 = smul.u32 4, %s22
          %s790 = ssub.s32 512, 512
          %791 = vsyncadd %s781, %s790
          %s792 = smul.addr %s788, 128
          %s793 = scalar_lea.hbm %s8, %s792
          %s794 = sshll.u32 %s784, 4
          %s795 = int_to_ptr.vmem [resolvable:$true] %s794
          %800 = dma.vmem_to_hbm [thread:$0]  %s795, 512, %s793, %s781, 128, 128, 8
        $region56: #{tpu_custom_call.1} parent=51 // pred_fallthru
          _
      $region52: #{tpu_custom_call.1} parent=5 // pred_fallthru
        _
      %p801 = scmp.le.s32.totalorder 2, %s17
      // Predicated region
      $region57: #{tpu_custom_call.1} parent=5 // pred_check
        %p802 = pneg %p801
      $region58: #{tpu_custom_call.1} parent=5 // pred_check_branch
        %804 = sbr.rel (%p802) target = $region60
      $region59: #{tpu_custom_call.1} parent=5 // pred_region
        %s805 = ssub.s32 %s17, 2
        // Predicated region
        $region61: #{tpu_custom_call.1} parent=59 // pred_check
          %p806 = pneg %p224
        $region62: #{tpu_custom_call.1} parent=59 // pred_check_branch
          %808 = sbr.rel (%p806) target = $region64
        $region63: #{tpu_custom_call.1} parent=59 // pred_region
          %s809 = sand.u32 %s209, 1
          %s810 = scalar_lea.sflag [#allocation3], %s809
          %s811 = sand.u32 %s209, 1
          %s812 = smul.addr %s811, 32
          %s813 = scalar_lea.vmem [#allocation2], %s812
          %814 = dma.done %s810, 512
        $region64: #{tpu_custom_call.1} parent=59 // pred_fallthru
          _
      $region60: #{tpu_custom_call.1} parent=5 // pred_fallthru
        _
    $region6: #{tpu_custom_call.1} parent=1 // loop_footer
      %s21 = sadd.s32 1, %s17
    $region7: #{tpu_custom_call.1} parent=1 // loop_footer_branch
      %16 = sbr.rel target = $region3
    $region8: #{tpu_custom_call.1} parent=1 // loop_exit
      _
    %815 = vsyncpa [#allocation3], 1
    %s816 = scalar_lea.sflag [#allocation3], 1
    %817 = vsyncpa %s816, 1

</llo_original>
